<compile_context>
chip_gen: v7x
topology: tpu7x:2x2x1
jax: 0.10.0
libtpu: 0.0.40
codegen_flags: <defaults>
</compile_context>

<pallas_src>
import math
from functools import partial

import jax
import jax.numpy as jnp
from jax.experimental import pallas as pl
from jax.experimental.pallas import tpu as pltpu

_LANE = 128


# ---------------------------------------------------------------------------
# Host-side: pack all weights/biases into one lane-padded slab
# ---------------------------------------------------------------------------
def _pack_slab(named_arrays):
    """Pack 2-D tensors into one (R, 128) f32 slab.

    Each tensor is zero-padded to 128 lanes and its row count rounded up to a
    multiple of 8, so every block starts at an 8-aligned sublane offset and
    in-kernel slices are cheap static loads.  Returns (slab, offsets) with
    offsets[name] = (row_offset, rows, cols).
    """
    blocks, offsets, r0 = [], {}, 0
    for name, arr in named_arrays:
        arr = jnp.asarray(arr, jnp.float32)
        r, c = arr.shape
        assert c <= _LANE, f"{name}: {c} lanes > 128 unsupported by slab packer"
        rp = ((r + 7) // 8) * 8
        blk = jnp.zeros((rp, _LANE), jnp.float32).at[:r, :c].set(arr)
        blocks.append(blk)
        offsets[name] = (r0, r, c)
        r0 += rp
    return jnp.concatenate(blocks, axis=0), offsets


# ---------------------------------------------------------------------------
# Fused kernel: whole SAGNetworkGlobal forward for one graph (one grid step)
# ---------------------------------------------------------------------------
def _fused_sag_kernel(a_ref, x_ref, slab_ref, o_ref, *,
                      offs, num_convs, hid, k, out_dim):
    def slab(name, lanes=None):
        r0, r, c = offs[name]
        return slab_ref[r0:r0 + r, 0:(c if lanes is None else lanes)]

    n = a_ref.shape[0]
    a = a_ref[...]                              # (N,N); may be bf16 at scale
    a_f32 = a.astype(jnp.float32)

    # ---- GraphConv stack:  h <- A_norm @ (h @ W) + b -----------------------
    h = x_ref[...]
    conv_outs = []
    for i in range(num_convs):
        w = slab(f"conv{i}_w")
        b = slab(f"conv{i}_b")
        xw = jnp.dot(h, w, preferred_element_type=jnp.float32)
        h = jnp.dot(a, xw.astype(a.dtype), preferred_element_type=jnp.float32) + b
        conv_outs.append(h)                      # kept as per-piece (N, hid)

    # ---- SAGPool score: GraphConv(concat -> 1), no concat, no 1-lane MXU ---
    pool_w = slab("pool_w")                      # (num_convs, hid): row i = piece i
    xw_col = jnp.zeros((n, 1), jnp.float32)
    for i in range(num_convs):
        xw_col = xw_col + jnp.sum(conv_outs[i] * pool_w[i:i + 1, :],
                                  axis=-1, keepdims=True)
    pool_b = slab("pool_b")                      # (1, 1)
    # a_norm is symmetric  =>  (A @ xw)^T == sublane-reduce of (A * xw_col)
    score_row = jnp.sum(a_f32 * xw_col, axis=0, keepdims=True) + pool_b   # (1,N)

    # per-node (sublane) score copy via identity-masked lane reduce
    row_i = jax.lax.broadcasted_iota(jnp.int32, (n, n), 0)
    col_i = jax.lax.broadcasted_iota(jnp.int32, (n, n), 1)
    score_col = jnp.sum(jnp.where(row_i == col_i, score_row, 0.0),
                        axis=-1, keepdims=True)                          # (N,1)

    # ---- top-k mask via rank (ties -> lower index, matches lax.top_k) ------
    # TODO(synk): O(N^2) comparison matrices; switch to a histogram/threshold
    # bisection count (O(N log) with only (N,1)/(1,N) vectors) for large N.
    greater = score_row > score_col              # [i,j] = s_j >  s_i
    tie_lo = (score_row == score_col) & (col_i < row_i)
    rank = jnp.sum((greater | tie_lo).astype(jnp.float32), axis=-1, keepdims=True)
    keep = rank < float(k)                       # exactly k True rows
    keep_f = keep.astype(jnp.float32)

    # ---- tanh-scale + masked avg/max readout + lin1, per 32-lane piece -----
    tanh_s = jnp.tanh(score_col)                 # (N,1)
    l1w = slab("lin1_w")                         # (2*num_convs*hid, hid)
    h1 = slab("lin1_b")                          # (1, hid) -- start from bias
    inv_k = 1.0 / float(k)
    for i in range(num_convs):
        scaled = conv_outs[i] * tanh_s                                   # (N,hid)
        avg_r = jnp.sum(scaled * keep_f, axis=0, keepdims=True) * inv_k  # (1,hid)
        max_r = jnp.max(jnp.where(keep, scaled, -jnp.inf), axis=0, keepdims=True)
        w_avg = l1w[i * hid:(i + 1) * hid, :]
        w_max = l1w[(num_convs + i) * hid:(num_convs + i + 1) * hid, :]
        h1 = (h1
              + jnp.dot(avg_r, w_avg, preferred_element_type=jnp.float32)
              + jnp.dot(max_r, w_max, preferred_element_type=jnp.float32))
    hh = jnp.maximum(h1, 0.0)
    # TODO(synk): dropout with p > 0 (training) would need pltpu.prng_*; the
    # module default p = 0.0 makes it an identity.

    hh = jnp.maximum(jnp.dot(hh, slab("lin2_w"),
                             preferred_element_type=jnp.float32)
                     + slab("lin2_b"), 0.0)
    logits = (jnp.dot(hh, slab("lin3_w", lanes=_LANE),
                      preferred_element_type=jnp.float32)
              + slab("lin3_b", lanes=_LANE))                             # (1,128)

    # ---- masked log_softmax over the first out_dim (valid) lanes -----------
    lane = jax.lax.broadcasted_iota(jnp.int32, logits.shape, 1)
    valid = lane < out_dim
    neg = jnp.float32(-1e30)
    m = jnp.max(jnp.where(valid, logits, neg), axis=-1, keepdims=True)
    z = logits - m
    sumexp = jnp.sum(jnp.where(valid, jnp.exp(z), 0.0), axis=-1, keepdims=True)
    o_ref[...] = jnp.where(valid, z - jnp.log(sumexp), 0.0)


# ---------------------------------------------------------------------------
# Wrapper: slab packing, grid over graphs, compiler params / cost estimate
# ---------------------------------------------------------------------------
def sag_network_global_forward(a_norm, feat, params, *, num_convs=3,
                               pool_ratio=0.5, adj_dtype=jnp.float32):
    """a_norm: (B,N,N) symmetric normalized adjacency; feat: (B,N,F)."""
    bsz, n, _ = a_norm.shape
    f_dim = feat.shape[-1]
    hid = params["conv0_w"].shape[1]
    out_dim = params["lin3_w"].shape[1]
    concat = num_convs * hid
    k = int(math.ceil(pool_ratio * n))
    pad_out = ((out_dim + _LANE - 1) // _LANE) * _LANE
    assert hid % 8 == 0, "hid must be a multiple of 8 for aligned slab slices"

    # ---- one packed, lane-padded weight slab (one DMA instead of 16) -------
    named = []
    for i in range(num_convs):
        named += [(f"conv{i}_w", params[f"conv{i}_w"]),
                  (f"conv{i}_b", params[f"conv{i}_b"])]
    named += [
        ("pool_w", jnp.reshape(params["pool_w"][:, 0], (num_convs, hid))),
        ("pool_b", params["pool_b"]),
        ("lin1_w", params["lin1_w"]),
        ("lin1_b", params["lin1_b"]),
        ("lin2_w", params["lin2_w"]),
        ("lin2_b", params["lin2_b"]),
        ("lin3_w", params["lin3_w"]),
        ("lin3_b", params["lin3_b"]),
    ]
    slab, offs = _pack_slab(named)

    a_in = a_norm.astype(adj_dtype)   # bf16 halves the (N,N) VMEM/DMA at scale

    # ---- advisory cost estimate + explicit scoped-VMEM limit ---------------
    flops, fi = 0, f_dim
    for _ in range(num_convs):
        flops += 2 * n * fi * hid + 2 * n * n * hid
        fi = hid
    flops += 2 * n * concat + 2 * n * n           # pool score
    flops += 4 * n * n                            # rank comparisons
    flops += 4 * concat * hid + 2 * hid * (hid // 2) + 2 * (hid // 2) * pad_out
    flops *= bsz
    transcendentals = bsz * (n + pad_out)         # tanh + exp
    itemsize = jnp.dtype(adj_dtype).itemsize
    bytes_accessed = (a_in.size * itemsize + feat.size * 4
                      + slab.size * 4 + bsz * pad_out * 4)
    block_bytes = (n * n * itemsize + n * f_dim * 4 + slab.size * 4 + pad_out * 4)
    vmem_limit = min(int(2 * block_bytes) + (16 << 20), 100 << 20)

    kernel = partial(_fused_sag_kernel, offs=offs, num_convs=num_convs,
                     hid=hid, k=k, out_dim=out_dim)

    out_pad = pl.pallas_call(
        kernel,
        out_shape=jax.ShapeDtypeStruct((bsz, 1, pad_out), jnp.float32),
        grid=(bsz,),
        in_specs=[
            pl.BlockSpec((None, n, n), lambda g: (g, 0, 0)),      # per-graph A
            pl.BlockSpec((None, n, f_dim), lambda g: (g, 0, 0)),  # per-graph X
            pl.BlockSpec(slab.shape, lambda g: (0, 0)),           # resident slab
        ],
        out_specs=pl.BlockSpec((None, 1, pad_out), lambda g: (g, 0, 0)),
        compiler_params=pltpu.CompilerParams(
            dimension_semantics=("parallel",),
            vmem_limit_bytes=vmem_limit),
        cost_estimate=pl.CostEstimate(flops=int(flops),
                                      transcendentals=int(transcendentals),
                                      bytes_accessed=int(bytes_accessed)),
    )(a_in, feat, slab)
    return out_pad[:, 0, :out_dim]


# ---------------------------------------------------------------------------
# plain-JAX reference (single graph) for the correctness check
# ---------------------------------------------------------------------------
def reference_forward(a_norm, feat, params, *, num_convs=3, pool_ratio=0.5):
    n = feat.shape[0]
    h = feat
    res = []
    for i in range(num_convs):
        h = a_norm @ (h @ params[f"conv{i}_w"]) + params[f"conv{i}_b"]
        res.append(h)
    cat = jnp.concatenate(res, axis=-1)
    score = (a_norm @ (cat @ params["pool_w"]) + params["pool_b"])[:, 0]
    k = int(math.ceil(pool_ratio * n))
    _, idx = jax.lax.top_k(score, k)
    sel = cat[idx] * jnp.tanh(score[idx])[:, None]
    read = jnp.concatenate([sel.mean(0, keepdims=True), sel.max(0, keepdims=True)], -1)
    h = jnp.maximum(read @ params["lin1_w"] + params["lin1_b"], 0.0)
    h = jnp.maximum(h @ params["lin2_w"] + params["lin2_b"], 0.0)
    logits = h @ params["lin3_w"] + params["lin3_b"]
    return jax.nn.log_softmax(logits, axis=-1)


# ---------------------------------------------------------------------------
if __name__ == "__main__":
    B = 2           # graphs per call (grid axis -> both TCs on v7x)
    N = 16          # nodes per graph (multiple of 8 keeps sublane tiling exact)
    IN_DIM = 8
    HID_DIM = 32
    OUT_DIM = 4
    NUM_CONVS = 3
    POOL_RATIO = 0.5
    CONCAT = NUM_CONVS * HID_DIM

    key = jax.random.PRNGKey(0)
    ks = jax.random.split(key, 16)

    def init(kk, shape, scale=0.1):
        return jax.random.normal(kk, shape, jnp.float32) * scale

    params = {
        "conv0_w": init(ks[0], (IN_DIM, HID_DIM)),
        "conv0_b": init(ks[1], (1, HID_DIM)),
        "conv1_w": init(ks[2], (HID_DIM, HID_DIM)),
        "conv1_b": init(ks[3], (1, HID_DIM)),
        "conv2_w": init(ks[4], (HID_DIM, HID_DIM)),
        "conv2_b": init(ks[5], (1, HID_DIM)),
        "pool_w":  init(ks[6], (CONCAT, 1)),
        "pool_b":  init(ks[7], (1, 1)),
        "lin1_w":  init(ks[8], (2 * CONCAT, HID_DIM)),
        "lin1_b":  init(ks[9], (1, HID_DIM)),
        "lin2_w":  init(ks[10], (HID_DIM, HID_DIM // 2)),
        "lin2_b":  init(ks[11], (1, HID_DIM // 2)),
        "lin3_w":  init(ks[12], (HID_DIM // 2, OUT_DIM)),
        "lin3_b":  init(ks[13], (1, OUT_DIM)),
    }

    feat = jax.random.normal(ks[14], (B, N, IN_DIM), jnp.float32)

    # deterministic undirected graphs (ring + chords) -> symmetric D^-1/2 A D^-1/2
    def build_adj(chord):
        idx = jnp.arange(N)
        A = jnp.zeros((N, N), jnp.float32)
        A = A.at[idx, (idx + 1) % N].set(1.0)
        A = A.at[(idx + 1) % N, idx].set(1.0)
        A = A.at[idx, (idx + chord) % N].set(1.0)
        A = A.at[(idx + chord) % N, idx].set(1.0)
        deg = jnp.maximum(A.sum(axis=1), 1.0)      # DGL clamps deg to min 1
        dinv = deg ** -0.5
        return A * dinv[:, None] * dinv[None, :]

    a_norm = jnp.stack([build_adj(5), build_adj(3)], axis=0)

    out = sag_network_global_forward(a_norm, feat, params,
                                     num_convs=NUM_CONVS, pool_ratio=POOL_RATIO)
    out = jax.block_until_ready(out)

    ref = jnp.stack([reference_forward(a_norm[i], feat[i], params,
                                       num_convs=NUM_CONVS,
                                       pool_ratio=POOL_RATIO)[0]
                     for i in range(B)], axis=0)
    assert out.shape == (B, OUT_DIM), out.shape
    assert jnp.allclose(out, ref, rtol=1e-4, atol=1e-4), (out, ref)

    # bf16-adjacency path (v6e/v7x VMEM scaling) — smoke test of the lowering
    out_bf16 = sag_network_global_forward(a_norm, feat, params,
                                          num_convs=NUM_CONVS,
                                          pool_ratio=POOL_RATIO,
                                          adj_dtype=jnp.bfloat16)
    out_bf16 = jax.block_until_ready(out_bf16)
    assert out_bf16.shape == (B, OUT_DIM)
    assert bool(jnp.all(jnp.isfinite(out_bf16)))

    print("KERNEL_OK")
</pallas_src>

<mosaic_0001>
module attributes {stable_mosaic.version = 11 : i64} {
  func.func @_fused_sag_kernel(%arg0: i32, %arg1: memref<1x16x16xf32, #tpu.memory_space<vmem>>, %arg2: memref<1x16x8xf32, #tpu.memory_space<vmem>>, %arg3: memref<376x128xf32, #tpu.memory_space<vmem>>, %arg4: memref<1x1x128xf32, #tpu.memory_space<vmem>>) attributes {dimension_semantics = [#tpu.dimension_semantics<parallel>], iteration_bounds = array<i64: 2>, scalar_prefetch = 0 : i64, scratch_operands = 0 : i64, tpu.core_type = #tpu.core_type<tc>, window_params = [{transform_indices = @transform_0, window_bounds = array<i64: 1, 16, 16>}, {transform_indices = @transform_1, window_bounds = array<i64: 1, 16, 8>}, {pipeline_mode = #tpu.pipeline_mode<synchronous>, transform_indices = @transform_2, window_bounds = array<i64: 376, 128>}, {transform_indices = @transform_3, window_bounds = array<i64: 1, 1, 128>}]} {
    %c0 = arith.constant 0 : index
    %c0_0 = arith.constant 0 : index
    %c0_1 = arith.constant 0 : index
    %0 = vector.load %arg1[%c0, %c0_0, %c0_1] : memref<1x16x16xf32, #tpu.memory_space<vmem>>, vector<1x16x16xf32>
    %1 = vector.shape_cast %0 : vector<1x16x16xf32> to vector<16x16xf32>
    %c0_2 = arith.constant 0 : index
    %c0_3 = arith.constant 0 : index
    %c0_4 = arith.constant 0 : index
    %2 = vector.load %arg2[%c0_2, %c0_3, %c0_4] : memref<1x16x8xf32, #tpu.memory_space<vmem>>, vector<1x16x8xf32>
    %3 = vector.shape_cast %2 : vector<1x16x8xf32> to vector<16x8xf32>
    %c0_5 = arith.constant 0 : index
    %c0_6 = arith.constant 0 : index
    %4 = vector.load %arg3[%c0_5, %c0_6] : memref<376x128xf32, #tpu.memory_space<vmem>>, vector<8x32xf32>
    %c8 = arith.constant 8 : index
    %c0_7 = arith.constant 0 : index
    %5 = vector.load %arg3[%c8, %c0_7] : memref<376x128xf32, #tpu.memory_space<vmem>>, vector<1x32xf32>
    %cst = arith.constant dense<0.000000e+00> : vector<16x32xf32>
    %6 = tpu.matmul %3, %4, %cst {dimension_numbers = #tpu.dot_dimension_numbers<[1], [0], [0], [1], [0, 0, 1, 1], [], []>} : vector<16x8xf32>, vector<8x32xf32>, vector<16x32xf32> -> vector<16x32xf32>
    %cst_8 = arith.constant dense<0.000000e+00> : vector<16x32xf32>
    %7 = tpu.matmul %1, %6, %cst_8 {dimension_numbers = #tpu.dot_dimension_numbers<[1], [0], [0], [1], [0, 0, 1, 1], [], []>} : vector<16x16xf32>, vector<16x32xf32>, vector<16x32xf32> -> vector<16x32xf32>
    %8 = vector.broadcast %5 : vector<1x32xf32> to vector<16x32xf32>
    %9 = arith.addf %7, %8 : vector<16x32xf32>
    %c16 = arith.constant 16 : index
    %c0_9 = arith.constant 0 : index
    %10 = vector.load %arg3[%c16, %c0_9] : memref<376x128xf32, #tpu.memory_space<vmem>>, vector<32x32xf32>
    %c48 = arith.constant 48 : index
    %c0_10 = arith.constant 0 : index
    %11 = vector.load %arg3[%c48, %c0_10] : memref<376x128xf32, #tpu.memory_space<vmem>>, vector<1x32xf32>
    %cst_11 = arith.constant dense<0.000000e+00> : vector<16x32xf32>
    %12 = tpu.matmul %9, %10, %cst_11 {dimension_numbers = #tpu.dot_dimension_numbers<[1], [0], [0], [1], [0, 0, 1, 1], [], []>} : vector<16x32xf32>, vector<32x32xf32>, vector<16x32xf32> -> vector<16x32xf32>
    %cst_12 = arith.constant dense<0.000000e+00> : vector<16x32xf32>
    %13 = tpu.matmul %1, %12, %cst_12 {dimension_numbers = #tpu.dot_dimension_numbers<[1], [0], [0], [1], [0, 0, 1, 1], [], []>} : vector<16x16xf32>, vector<16x32xf32>, vector<16x32xf32> -> vector<16x32xf32>
    %14 = vector.broadcast %11 : vector<1x32xf32> to vector<16x32xf32>
    %15 = arith.addf %13, %14 : vector<16x32xf32>
    %c56 = arith.constant 56 : index
    %c0_13 = arith.constant 0 : index
    %16 = vector.load %arg3[%c56, %c0_13] : memref<376x128xf32, #tpu.memory_space<vmem>>, vector<32x32xf32>
    %c88 = arith.constant 88 : index
    %c0_14 = arith.constant 0 : index
    %17 = vector.load %arg3[%c88, %c0_14] : memref<376x128xf32, #tpu.memory_space<vmem>>, vector<1x32xf32>
    %cst_15 = arith.constant dense<0.000000e+00> : vector<16x32xf32>
    %18 = tpu.matmul %15, %16, %cst_15 {dimension_numbers = #tpu.dot_dimension_numbers<[1], [0], [0], [1], [0, 0, 1, 1], [], []>} : vector<16x32xf32>, vector<32x32xf32>, vector<16x32xf32> -> vector<16x32xf32>
    %cst_16 = arith.constant dense<0.000000e+00> : vector<16x32xf32>
    %19 = tpu.matmul %1, %18, %cst_16 {dimension_numbers = #tpu.dot_dimension_numbers<[1], [0], [0], [1], [0, 0, 1, 1], [], []>} : vector<16x16xf32>, vector<16x32xf32>, vector<16x32xf32> -> vector<16x32xf32>
    %20 = vector.broadcast %17 : vector<1x32xf32> to vector<16x32xf32>
    %21 = arith.addf %19, %20 : vector<16x32xf32>
    %c96 = arith.constant 96 : index
    %c0_17 = arith.constant 0 : index
    %22 = vector.load %arg3[%c96, %c0_17] : memref<376x128xf32, #tpu.memory_space<vmem>>, vector<3x32xf32>
    %cst_18 = arith.constant 0.000000e+00 : f32
    %23 = vector.broadcast %cst_18 : f32 to vector<16x1xf32>
    %24 = vector.extract_strided_slice %22 {offsets = [0, 0], sizes = [1, 32], strides = [1, 1]} : vector<3x32xf32> to vector<1x32xf32>
    %25 = vector.broadcast %24 : vector<1x32xf32> to vector<16x32xf32>
    %26 = arith.mulf %9, %25 : vector<16x32xf32>
    %cst_19 = arith.constant dense<0.000000e+00> : vector<16xf32>
    %27 = vector.multi_reduction <add>, %26, %cst_19 [1] : vector<16x32xf32> to vector<16xf32>
    %28 = vector.shape_cast %27 : vector<16xf32> to vector<16x1xf32>
    %29 = arith.addf %23, %28 : vector<16x1xf32>
    %30 = vector.extract_strided_slice %22 {offsets = [1, 0], sizes = [1, 32], strides = [1, 1]} : vector<3x32xf32> to vector<1x32xf32>
    %31 = vector.broadcast %30 : vector<1x32xf32> to vector<16x32xf32>
    %32 = arith.mulf %15, %31 : vector<16x32xf32>
    %cst_20 = arith.constant dense<0.000000e+00> : vector<16xf32>
    %33 = vector.multi_reduction <add>, %32, %cst_20 [1] : vector<16x32xf32> to vector<16xf32>
    %34 = vector.shape_cast %33 : vector<16xf32> to vector<16x1xf32>
    %35 = arith.addf %29, %34 : vector<16x1xf32>
    %36 = vector.extract_strided_slice %22 {offsets = [2, 0], sizes = [1, 32], strides = [1, 1]} : vector<3x32xf32> to vector<1x32xf32>
    %37 = vector.broadcast %36 : vector<1x32xf32> to vector<16x32xf32>
    %38 = arith.mulf %21, %37 : vector<16x32xf32>
    %cst_21 = arith.constant dense<0.000000e+00> : vector<16xf32>
    %39 = vector.multi_reduction <add>, %38, %cst_21 [1] : vector<16x32xf32> to vector<16xf32>
    %40 = vector.shape_cast %39 : vector<16xf32> to vector<16x1xf32>
    %41 = arith.addf %35, %40 : vector<16x1xf32>
    %c104 = arith.constant 104 : index
    %c0_22 = arith.constant 0 : index
    %42 = vector.load %arg3[%c104, %c0_22] : memref<376x128xf32, #tpu.memory_space<vmem>>, vector<1x1xf32>
    %43 = vector.broadcast %41 : vector<16x1xf32> to vector<16x16xf32>
    %44 = arith.mulf %1, %43 : vector<16x16xf32>
    %cst_23 = arith.constant dense<0.000000e+00> : vector<16xf32>
    %45 = vector.multi_reduction <add>, %44, %cst_23 [0] : vector<16x16xf32> to vector<16xf32>
    %46 = vector.shape_cast %45 : vector<16xf32> to vector<1x16xf32>
    %47 = vector.broadcast %42 : vector<1x1xf32> to vector<1x16xf32>
    %48 = arith.addf %46, %47 : vector<1x16xf32>
    %49 = tpu.iota {dimensions = array<i32: 0>} : vector<16x16xi32>
    %50 = tpu.iota {dimensions = array<i32: 1>} : vector<16x16xi32>
    %51 = arith.cmpi eq, %49, %50 : vector<16x16xi32>
    %cst_24 = arith.constant 0.000000e+00 : f32
    %52 = vector.shape_cast %48 : vector<1x16xf32> to vector<1x16xf32>
    %53 = vector.broadcast %52 : vector<1x16xf32> to vector<16x16xf32>
    %54 = vector.broadcast %cst_24 : f32 to vector<16x16xf32>
    %55 = arith.select %51, %53, %54 : vector<16x16xi1>, vector<16x16xf32>
    %cst_25 = arith.constant dense<0.000000e+00> : vector<16xf32>
    %56 = vector.multi_reduction <add>, %55, %cst_25 [1] : vector<16x16xf32> to vector<16xf32>
    %57 = vector.shape_cast %56 : vector<16xf32> to vector<16x1xf32>
    %58 = vector.broadcast %48 : vector<1x16xf32> to vector<16x16xf32>
    %59 = vector.broadcast %57 : vector<16x1xf32> to vector<16x16xf32>
    %60 = arith.cmpf ogt, %58, %59 : vector<16x16xf32>
    %61 = vector.broadcast %48 : vector<1x16xf32> to vector<16x16xf32>
    %62 = vector.broadcast %57 : vector<16x1xf32> to vector<16x16xf32>
    %63 = arith.cmpf oeq, %61, %62 : vector<16x16xf32>
    %64 = arith.cmpi slt, %50, %49 : vector<16x16xi32>
    %65 = arith.andi %63, %64 : vector<16x16xi1>
    %66 = arith.ori %60, %65 : vector<16x16xi1>
    %67 = arith.extui %66 : vector<16x16xi1> to vector<16x16xi32>
    %68 = arith.sitofp %67 : vector<16x16xi32> to vector<16x16xf32>
    %cst_26 = arith.constant dense<0.000000e+00> : vector<16xf32>
    %69 = vector.multi_reduction <add>, %68, %cst_26 [1] : vector<16x16xf32> to vector<16xf32>
    %70 = vector.shape_cast %69 : vector<16xf32> to vector<16x1xf32>
    %cst_27 = arith.constant 8.000000e+00 : f32
    %71 = vector.broadcast %cst_27 : f32 to vector<16x1xf32>
    %72 = arith.cmpf olt, %70, %71 : vector<16x1xf32>
    %73 = arith.extui %72 : vector<16x1xi1> to vector<16x1xi32>
    %74 = arith.sitofp %73 : vector<16x1xi32> to vector<16x1xf32>
    %75 = math.tanh %57 : vector<16x1xf32>
    %c112 = arith.constant 112 : index
    %c0_28 = arith.constant 0 : index
    %76 = vector.load %arg3[%c112, %c0_28] : memref<376x128xf32, #tpu.memory_space<vmem>>, vector<192x32xf32>
    %c304 = arith.constant 304 : index
    %c0_29 = arith.constant 0 : index
    %77 = vector.load %arg3[%c304, %c0_29] : memref<376x128xf32, #tpu.memory_space<vmem>>, vector<1x32xf32>
    %78 = vector.broadcast %75 : vector<16x1xf32> to vector<16x32xf32>
    %79 = arith.mulf %9, %78 : vector<16x32xf32>
    %80 = vector.broadcast %74 : vector<16x1xf32> to vector<16x32xf32>
    %81 = arith.mulf %79, %80 : vector<16x32xf32>
    %cst_30 = arith.constant dense<0.000000e+00> : vector<32xf32>
    %82 = vector.multi_reduction <add>, %81, %cst_30 [0] : vector<16x32xf32> to vector<32xf32>
    %83 = vector.shape_cast %82 : vector<32xf32> to vector<1x32xf32>
    %cst_31 = arith.constant 1.250000e-01 : f32
    %84 = vector.broadcast %cst_31 : f32 to vector<1x32xf32>
    %85 = arith.mulf %83, %84 : vector<1x32xf32>
    %cst_32 = arith.constant 0xFF800000 : f32
    %86 = vector.shape_cast %72 : vector<16x1xi1> to vector<16x1xi1>
    %87 = vector.broadcast %86 : vector<16x1xi1> to vector<16x32xi1>
    %88 = vector.broadcast %cst_32 : f32 to vector<16x32xf32>
    %89 = arith.select %87, %79, %88 : vector<16x32xi1>, vector<16x32xf32>
    %cst_33 = arith.constant dense<0xFF800000> : vector<32xf32>
    %90 = vector.multi_reduction <maximumf>, %89, %cst_33 [0] : vector<16x32xf32> to vector<32xf32>
    %91 = vector.shape_cast %90 : vector<32xf32> to vector<1x32xf32>
    %92 = vector.extract_strided_slice %76 {offsets = [0, 0], sizes = [32, 32], strides = [1, 1]} : vector<192x32xf32> to vector<32x32xf32>
    %93 = vector.extract_strided_slice %76 {offsets = [96, 0], sizes = [32, 32], strides = [1, 1]} : vector<192x32xf32> to vector<32x32xf32>
    %cst_34 = arith.constant dense<0.000000e+00> : vector<1x32xf32>
    %94 = tpu.matmul %85, %92, %cst_34 {dimension_numbers = #tpu.dot_dimension_numbers<[1], [0], [0], [1], [0, 0, 1, 1], [], []>} : vector<1x32xf32>, vector<32x32xf32>, vector<1x32xf32> -> vector<1x32xf32>
    %95 = arith.addf %77, %94 : vector<1x32xf32>
    %cst_35 = arith.constant dense<0.000000e+00> : vector<1x32xf32>
    %96 = tpu.matmul %91, %93, %cst_35 {dimension_numbers = #tpu.dot_dimension_numbers<[1], [0], [0], [1], [0, 0, 1, 1], [], []>} : vector<1x32xf32>, vector<32x32xf32>, vector<1x32xf32> -> vector<1x32xf32>
    %97 = arith.addf %95, %96 : vector<1x32xf32>
    %98 = vector.broadcast %75 : vector<16x1xf32> to vector<16x32xf32>
    %99 = arith.mulf %15, %98 : vector<16x32xf32>
    %100 = vector.broadcast %74 : vector<16x1xf32> to vector<16x32xf32>
    %101 = arith.mulf %99, %100 : vector<16x32xf32>
    %cst_36 = arith.constant dense<0.000000e+00> : vector<32xf32>
    %102 = vector.multi_reduction <add>, %101, %cst_36 [0] : vector<16x32xf32> to vector<32xf32>
    %103 = vector.shape_cast %102 : vector<32xf32> to vector<1x32xf32>
    %cst_37 = arith.constant 1.250000e-01 : f32
    %104 = vector.broadcast %cst_37 : f32 to vector<1x32xf32>
    %105 = arith.mulf %103, %104 : vector<1x32xf32>
    %cst_38 = arith.constant 0xFF800000 : f32
    %106 = vector.shape_cast %72 : vector<16x1xi1> to vector<16x1xi1>
    %107 = vector.broadcast %106 : vector<16x1xi1> to vector<16x32xi1>
    %108 = vector.broadcast %cst_38 : f32 to vector<16x32xf32>
    %109 = arith.select %107, %99, %108 : vector<16x32xi1>, vector<16x32xf32>
    %cst_39 = arith.constant dense<0xFF800000> : vector<32xf32>
    %110 = vector.multi_reduction <maximumf>, %109, %cst_39 [0] : vector<16x32xf32> to vector<32xf32>
    %111 = vector.shape_cast %110 : vector<32xf32> to vector<1x32xf32>
    %112 = vector.extract_strided_slice %76 {offsets = [32, 0], sizes = [32, 32], strides = [1, 1]} : vector<192x32xf32> to vector<32x32xf32>
    %113 = vector.extract_strided_slice %76 {offsets = [128, 0], sizes = [32, 32], strides = [1, 1]} : vector<192x32xf32> to vector<32x32xf32>
    %cst_40 = arith.constant dense<0.000000e+00> : vector<1x32xf32>
    %114 = tpu.matmul %105, %112, %cst_40 {dimension_numbers = #tpu.dot_dimension_numbers<[1], [0], [0], [1], [0, 0, 1, 1], [], []>} : vector<1x32xf32>, vector<32x32xf32>, vector<1x32xf32> -> vector<1x32xf32>
    %115 = arith.addf %97, %114 : vector<1x32xf32>
    %cst_41 = arith.constant dense<0.000000e+00> : vector<1x32xf32>
    %116 = tpu.matmul %111, %113, %cst_41 {dimension_numbers = #tpu.dot_dimension_numbers<[1], [0], [0], [1], [0, 0, 1, 1], [], []>} : vector<1x32xf32>, vector<32x32xf32>, vector<1x32xf32> -> vector<1x32xf32>
    %117 = arith.addf %115, %116 : vector<1x32xf32>
    %118 = vector.broadcast %75 : vector<16x1xf32> to vector<16x32xf32>
    %119 = arith.mulf %21, %118 : vector<16x32xf32>
    %120 = vector.broadcast %74 : vector<16x1xf32> to vector<16x32xf32>
    %121 = arith.mulf %119, %120 : vector<16x32xf32>
    %cst_42 = arith.constant dense<0.000000e+00> : vector<32xf32>
    %122 = vector.multi_reduction <add>, %121, %cst_42 [0] : vector<16x32xf32> to vector<32xf32>
    %123 = vector.shape_cast %122 : vector<32xf32> to vector<1x32xf32>
    %cst_43 = arith.constant 1.250000e-01 : f32
    %124 = vector.broadcast %cst_43 : f32 to vector<1x32xf32>
    %125 = arith.mulf %123, %124 : vector<1x32xf32>
    %cst_44 = arith.constant 0xFF800000 : f32
    %126 = vector.shape_cast %72 : vector<16x1xi1> to vector<16x1xi1>
    %127 = vector.broadcast %126 : vector<16x1xi1> to vector<16x32xi1>
    %128 = vector.broadcast %cst_44 : f32 to vector<16x32xf32>
    %129 = arith.select %127, %119, %128 : vector<16x32xi1>, vector<16x32xf32>
    %cst_45 = arith.constant dense<0xFF800000> : vector<32xf32>
    %130 = vector.multi_reduction <maximumf>, %129, %cst_45 [0] : vector<16x32xf32> to vector<32xf32>
    %131 = vector.shape_cast %130 : vector<32xf32> to vector<1x32xf32>
    %132 = vector.extract_strided_slice %76 {offsets = [64, 0], sizes = [32, 32], strides = [1, 1]} : vector<192x32xf32> to vector<32x32xf32>
    %133 = vector.extract_strided_slice %76 {offsets = [160, 0], sizes = [32, 32], strides = [1, 1]} : vector<192x32xf32> to vector<32x32xf32>
    %cst_46 = arith.constant dense<0.000000e+00> : vector<1x32xf32>
    %134 = tpu.matmul %125, %132, %cst_46 {dimension_numbers = #tpu.dot_dimension_numbers<[1], [0], [0], [1], [0, 0, 1, 1], [], []>} : vector<1x32xf32>, vector<32x32xf32>, vector<1x32xf32> -> vector<1x32xf32>
    %135 = arith.addf %117, %134 : vector<1x32xf32>
    %cst_47 = arith.constant dense<0.000000e+00> : vector<1x32xf32>
    %136 = tpu.matmul %131, %133, %cst_47 {dimension_numbers = #tpu.dot_dimension_numbers<[1], [0], [0], [1], [0, 0, 1, 1], [], []>} : vector<1x32xf32>, vector<32x32xf32>, vector<1x32xf32> -> vector<1x32xf32>
    %137 = arith.addf %135, %136 : vector<1x32xf32>
    %cst_48 = arith.constant 0.000000e+00 : f32
    %138 = vector.broadcast %cst_48 : f32 to vector<1x32xf32>
    %139 = arith.maximumf %137, %138 : vector<1x32xf32>
    %c312 = arith.constant 312 : index
    %c0_49 = arith.constant 0 : index
    %140 = vector.load %arg3[%c312, %c0_49] : memref<376x128xf32, #tpu.memory_space<vmem>>, vector<32x16xf32>
    %cst_50 = arith.constant dense<0.000000e+00> : vector<1x16xf32>
    %141 = tpu.matmul %139, %140, %cst_50 {dimension_numbers = #tpu.dot_dimension_numbers<[1], [0], [0], [1], [0, 0, 1, 1], [], []>} : vector<1x32xf32>, vector<32x16xf32>, vector<1x16xf32> -> vector<1x16xf32>
    %c344 = arith.constant 344 : index
    %c0_51 = arith.constant 0 : index
    %142 = vector.load %arg3[%c344, %c0_51] : memref<376x128xf32, #tpu.memory_space<vmem>>, vector<1x16xf32>
    %143 = arith.addf %141, %142 : vector<1x16xf32>
    %cst_52 = arith.constant 0.000000e+00 : f32
    %144 = vector.broadcast %cst_52 : f32 to vector<1x16xf32>
    %145 = arith.maximumf %143, %144 : vector<1x16xf32>
    %c352 = arith.constant 352 : index
    %c0_53 = arith.constant 0 : index
    %146 = vector.load %arg3[%c352, %c0_53] : memref<376x128xf32, #tpu.memory_space<vmem>>, vector<16x128xf32>
    %cst_54 = arith.constant dense<0.000000e+00> : vector<1x128xf32>
    %147 = tpu.matmul %145, %146, %cst_54 {dimension_numbers = #tpu.dot_dimension_numbers<[1], [0], [0], [1], [0, 0, 1, 1], [], []>} : vector<1x16xf32>, vector<16x128xf32>, vector<1x128xf32> -> vector<1x128xf32>
    %c368 = arith.constant 368 : index
    %c0_55 = arith.constant 0 : index
    %148 = vector.load %arg3[%c368, %c0_55] : memref<376x128xf32, #tpu.memory_space<vmem>>, vector<1x128xf32>
    %149 = arith.addf %147, %148 : vector<1x128xf32>
    %150 = tpu.iota {dimensions = array<i32: 1>} : vector<1x128xi32>
    %c4_i32 = arith.constant 4 : i32
    %151 = vector.broadcast %c4_i32 : i32 to vector<1x128xi32>
    %152 = arith.cmpi slt, %150, %151 : vector<1x128xi32>
    %cst_56 = arith.constant -1.000000e+30 : f32
    %153 = vector.broadcast %cst_56 : f32 to vector<1x128xf32>
    %154 = arith.select %152, %149, %153 : vector<1x128xi1>, vector<1x128xf32>
    %cst_57 = arith.constant dense<0xFF800000> : vector<1xf32>
    %155 = vector.multi_reduction <maximumf>, %154, %cst_57 [1] : vector<1x128xf32> to vector<1xf32>
    %156 = vector.shape_cast %155 : vector<1xf32> to vector<1x1xf32>
    %157 = vector.broadcast %156 : vector<1x1xf32> to vector<1x128xf32>
    %158 = arith.subf %149, %157 : vector<1x128xf32>
    %159 = math.exp %158 : vector<1x128xf32>
    %cst_58 = arith.constant 0.000000e+00 : f32
    %160 = vector.broadcast %cst_58 : f32 to vector<1x128xf32>
    %161 = arith.select %152, %159, %160 : vector<1x128xi1>, vector<1x128xf32>
    %cst_59 = arith.constant dense<0.000000e+00> : vector<1xf32>
    %162 = vector.multi_reduction <add>, %161, %cst_59 [1] : vector<1x128xf32> to vector<1xf32>
    %163 = vector.shape_cast %162 : vector<1xf32> to vector<1x1xf32>
    %164 = math.log %163 : vector<1x1xf32>
    %165 = vector.broadcast %164 : vector<1x1xf32> to vector<1x128xf32>
    %166 = arith.subf %158, %165 : vector<1x128xf32>
    %cst_60 = arith.constant 0.000000e+00 : f32
    %167 = vector.broadcast %cst_60 : f32 to vector<1x128xf32>
    %168 = arith.select %152, %166, %167 : vector<1x128xi1>, vector<1x128xf32>
    %c0_61 = arith.constant 0 : index
    %c0_62 = arith.constant 0 : index
    %c0_63 = arith.constant 0 : index
    %169 = vector.load %arg4[%c0_61, %c0_62, %c0_63] : memref<1x1x128xf32, #tpu.memory_space<vmem>>, vector<1x1x128xf32>
    %170 = vector.shape_cast %169 : vector<1x1x128xf32> to vector<1x128xf32>
    %171 = vector.shape_cast %168 : vector<1x128xf32> to vector<1x1x128xf32>
    tpu.vector_store %arg4[%c0_61, %c0_62, %c0_63], %171 {strides = array<i32>} : memref<1x1x128xf32, #tpu.memory_space<vmem>>, vector<1x1x128xf32>,
    return
  }
  func.func @transform_0(%arg0: i32) -> (i32, i32, i32) {
    %c0_i32 = arith.constant 0 : i32
    %c0_i32_0 = arith.constant 0 : i32
    %c0_i32_1 = arith.constant 0 : i32
    return %arg0, %c0_i32, %c0_i32_0 : i32, i32, i32
  }
  func.func @transform_1(%arg0: i32) -> (i32, i32, i32) {
    %c0_i32 = arith.constant 0 : i32
    %c0_i32_0 = arith.constant 0 : i32
    %c0_i32_1 = arith.constant 0 : i32
    return %arg0, %c0_i32, %c0_i32_0 : i32, i32, i32
  }
  func.func @transform_2(%arg0: i32) -> (i32, i32) {
    %c0_i32 = arith.constant 0 : i32
    %c0_i32_0 = arith.constant 0 : i32
    %c0_i32_1 = arith.constant 0 : i32
    return %c0_i32, %c0_i32_0 : i32, i32
  }
  func.func @transform_3(%arg0: i32) -> (i32, i32, i32) {
    %c0_i32 = arith.constant 0 : i32
    %c0_i32_0 = arith.constant 0 : i32
    %c0_i32_1 = arith.constant 0 : i32
    return %arg0, %c0_i32, %c0_i32_0 : i32, i32, i32
  }
}

</mosaic_0001>

<llo_original>
// kernel: tpu_custom_call.1
$region0: #{tpu_custom_call.1}
  #allocation0 [shape = 'u32[]', space=smem, size = 0x4, offset = 0x4, fixed_abs, tag = 'smem constant byte address 0x4 - core index']
  #allocation1 [shape = 'u32[144,128]{1,0:T(1,128)}', space=vmem, size = 0x12000, scoped, tag = 'internal scratch']
  %s0 = inlined_call_operand.vmem [shape: f32[2,16,16], index: 0, kind: input, shape index: {}]
  %s1 = inlined_call_operand.vmem [shape: f32[2,16,8], index: 1, kind: input, shape index: {}]
  %s2 = inlined_call_operand.hbm [shape: f32[376,128], index: 2, kind: input, shape index: {}]
  %s3 = inlined_call_operand.hbm [shape: f32[2,1,128], index: 3, kind: output, shape index: {}]
  %s4 = sld [smem:[#allocation0]]
  $region49: #{tpu_custom_call.1} parent=0
    _
  %s6 = ssub.s32 1, %s4
  %s7 = scalar_select 0, %s6, %s4
  $region1: #{tpu_custom_call.1} parent=0
    #allocation2 [shape = 'u8[192512]{0}', space=vmem, size = 0x2f000, scoped, tag = 'input window, operand 2, single buffered']
    #allocation3 [shape = 's32[2]{0}', space=sflag, size = 0x8, scoped, tag = 'scoped memory for tpu_custom_call.1']
    #allocation4 [shape = 's32[2]{0}', space=sflag, size = 0x8, scoped, tag = 'scoped memory for tpu_custom_call.1']
    #allocation5 [shape = 'u8[1024]{0}', space=vmem, size = 0x400, scoped, tag = 'output window, operand 0']
    %8 = vsyncpa [#allocation3], 0
    %9 = vsyncpa [#allocation4], 0
    %s10 = scalar_lea.sflag [#allocation4], 1
    %11 = vsyncpa %s10, 0
    loop: start=0, step=1, limit=4
    $region2: #{tpu_custom_call.1} parent=1 // loop_pre_header
      _
    $region3: #{tpu_custom_call.1} parent=1 // loop_header
      %s13 = sphi 0, %s17
      %p14 = scmp.ge.s32.totalorder %s13, 4
      %s23 = sphi 0, %s25
      %s26 = sphi 0, %s23
      %s27 = sphi 0, %s26
      %s43 = sphi 0, %s27
      %s49 = sphi 0, %s51
      %s52 = sphi 0, %s49
      %s53 = sphi 0, %s52
      %s69 = sphi 0, %s53
      %s73 = sphi 0, %s73
      %s75 = sphi 0, %s73
      %s76 = sphi 0, %s75
      %s90 = sphi 0, %s76
      %s96 = sphi 0, %s98
      %s99 = sphi 0, %s96
      %s100 = sphi 0, %s99
      %s116 = sphi 0, %s100
    $region4: #{tpu_custom_call.1} parent=1 // loop_header_branch
      %16 = sbr.rel (%p14) target = $region8
    $region5: #{tpu_custom_call.1} parent=1 // loop_body
      %s18 = ssub.s32 %s13, 1
      %s19 = ssub.s32 %s13, 2
      %s20 = sadd.s32 %s13, 1
      %s21 = ssub.s32 %s13, %s20
      %p22 = scmp.eq.s32.totalorder %s21, 0
      %s24 = sadd.s32 %s23, 1
      %s25 = scalar_select %p22, %s23, %s24
      %p28 = pneg %p22
      %p29 = scmp.eq.s32.totalorder %s13, 1
      %p30 = por %p28, %p29
      %p31 = scmp.ne.s32.totalorder %s23, %s26
      %p32 = scmp.eq.s32.totalorder %s13, 0
      %p33 = por %p31, %p32
      %p34 = scmp.ne.s32.totalorder %s23, %s26
      %p35 = scmp.eq.s32.totalorder %s18, 1
      %p36 = por %p34, %p35
      %p37 = scmp.ne.s32.totalorder %s26, %s27
      %p38 = scmp.eq.s32.totalorder %s18, 0
      %p39 = por %p37, %p38
      %p40 = scmp.ne.s32.totalorder %s26, %s27
      %p41 = scmp.eq.s32.totalorder %s19, 1
      %p42 = por %p40, %p41
      %p44 = scmp.ne.s32.totalorder %s27, %s43
      %p45 = scmp.eq.s32.totalorder %s19, 0
      %p46 = por %p44, %p45
      %s47 = ssub.s32 %s13, %s20
      %p48 = scmp.eq.s32.totalorder %s47, 0
      %s50 = sadd.s32 %s49, 1
      %s51 = scalar_select %p48, %s49, %s50
      %p54 = pneg %p48
      %p55 = scmp.eq.s32.totalorder %s13, 1
      %p56 = por %p54, %p55
      %p57 = scmp.ne.s32.totalorder %s49, %s52
      %p58 = scmp.eq.s32.totalorder %s13, 0
      %p59 = por %p57, %p58
      %p60 = scmp.ne.s32.totalorder %s49, %s52
      %p61 = scmp.eq.s32.totalorder %s18, 1
      %p62 = por %p60, %p61
      %p63 = scmp.ne.s32.totalorder %s52, %s53
      %p64 = scmp.eq.s32.totalorder %s18, 0
      %p65 = por %p63, %p64
      %p66 = scmp.ne.s32.totalorder %s52, %s53
      %p67 = scmp.eq.s32.totalorder %s19, 1
      %p68 = por %p66, %p67
      %p70 = scmp.ne.s32.totalorder %s53, %s69
      %p71 = scmp.eq.s32.totalorder %s19, 0
      %p72 = por %p70, %p71
      %s74 = sadd.s32 %s73, 1
      %p77 = scmp.eq.s32.totalorder %s13, 1
      %p78 = scmp.ne.s32.totalorder %s73, %s75
      %p79 = scmp.eq.s32.totalorder %s13, 0
      %p80 = por %p78, %p79
      %p81 = scmp.ne.s32.totalorder %s73, %s75
      %p82 = scmp.eq.s32.totalorder %s18, 1
      %p83 = por %p81, %p82
      %p84 = scmp.ne.s32.totalorder %s75, %s76
      %p85 = scmp.eq.s32.totalorder %s18, 0
      %p86 = por %p84, %p85
      %p87 = scmp.ne.s32.totalorder %s75, %s76
      %p88 = scmp.eq.s32.totalorder %s19, 1
      %p89 = por %p87, %p88
      %p91 = scmp.ne.s32.totalorder %s76, %s90
      %p92 = scmp.eq.s32.totalorder %s19, 0
      %p93 = por %p91, %p92
      %s94 = ssub.s32 %s13, %s20
      %p95 = scmp.eq.s32.totalorder %s94, 0
      %s97 = sadd.s32 %s96, 1
      %s98 = scalar_select %p95, %s96, %s97
      %p101 = pneg %p95
      %p102 = scmp.eq.s32.totalorder %s13, 1
      %p103 = por %p101, %p102
      %p104 = scmp.ne.s32.totalorder %s96, %s99
      %p105 = scmp.eq.s32.totalorder %s13, 0
      %p106 = por %p104, %p105
      %p107 = scmp.ne.s32.totalorder %s96, %s99
      %p108 = scmp.eq.s32.totalorder %s18, 1
      %p109 = por %p107, %p108
      %p110 = scmp.ne.s32.totalorder %s99, %s100
      %p111 = scmp.eq.s32.totalorder %s18, 0
      %p112 = por %p110, %p111
      %p113 = scmp.ne.s32.totalorder %s99, %s100
      %p114 = scmp.eq.s32.totalorder %s19, 1
      %p115 = por %p113, %p114
      %p117 = scmp.ne.s32.totalorder %s100, %s116
      %p118 = scmp.eq.s32.totalorder %s19, 0
      %p119 = por %p117, %p118
      %p120 = scmp.le.s32.totalorder 1, %s13
      %p121 = scmp.lt.s32.totalorder %s13, 3
      %p122 = pnand %p120, %p121
      %p123 = pneg %p122
      // Predicated region
      $region9: #{tpu_custom_call.1} parent=5 // pred_check
        _
      $region10: #{tpu_custom_call.1} parent=5 // pred_check_branch
        %125 = sbr.rel (%p122) target = $region12
      $region11: #{tpu_custom_call.1} parent=5 // pred_region
        %s126 = ssub.s32 %s13, 1
        // Predicated region
        $region13: #{tpu_custom_call.1} parent=11 // pred_check
          %p127 = pneg %p86
        $region14: #{tpu_custom_call.1} parent=11 // pred_check_branch
          %129 = sbr.rel (%p127) target = $region16
        $region15: #{tpu_custom_call.1} parent=11 // pred_region
          %s131 = ssub.s32 6016, 6016
          %132 = vsyncadd [#allocation3], %s131
          %s133 = sshll.u32 [#allocation2], 4
          %s134 = int_to_ptr.vmem [resolvable:$true] %s133
          %139 = dma.hbm_to_vmem [thread:$0]  %s2, 6016, %s134, [#allocation3], 128, 128, 8
        $region16: #{tpu_custom_call.1} parent=11 // pred_fallthru
          _
      $region12: #{tpu_custom_call.1} parent=5 // pred_fallthru
        _
      %p140 = scmp.lt.s32.totalorder %s13, 2
      // Predicated region
      $region17: #{tpu_custom_call.1} parent=5 // pred_check
        %p141 = pneg %p140
      $region18: #{tpu_custom_call.1} parent=5 // pred_check_branch
        %143 = sbr.rel (%p141) target = $region20
      $region19: #{tpu_custom_call.1} parent=5 // pred_region
        // Predicated region
        $region21: #{tpu_custom_call.1} parent=19 // pred_check
          %p144 = pneg %p33
        $region22: #{tpu_custom_call.1} parent=19 // pred_check_branch
          %146 = sbr.rel (%p144) target = $region24
        $region23: #{tpu_custom_call.1} parent=19 // pred_region
          %p147 = scmp.lt.s32.totalorder %s13, 1
          %s148 = scalar_select %p147, %s13, 1
          %s149 = smul.addr %s148, 2
          %s150 = smul.addr %s149, 8
          %s151 = scalar_lea.vmem %s0, %s150
        $region24: #{tpu_custom_call.1} parent=19 // pred_fallthru
          _
        // Predicated region
        $region25: #{tpu_custom_call.1} parent=19 // pred_check
          %p152 = pneg %p59
        $region26: #{tpu_custom_call.1} parent=19 // pred_check_branch
          %154 = sbr.rel (%p152) target = $region28
        $region27: #{tpu_custom_call.1} parent=19 // pred_region
          %p155 = scmp.lt.s32.totalorder %s13, 1
          %s156 = scalar_select %p155, %s13, 1
          %s157 = smul.addr %s156, 2
          %s158 = smul.addr %s157, 8
          %s159 = scalar_lea.vmem %s1, %s158
        $region28: #{tpu_custom_call.1} parent=19 // pred_fallthru
          _
      $region20: #{tpu_custom_call.1} parent=5 // pred_fallthru
        _
      %p160 = scmp.le.s32.totalorder 1, %s13
      %p161 = scmp.lt.s32.totalorder %s13, 3
      %p162 = pnand %p160, %p161
      %p163 = pneg %p162
      // Predicated region
      $region29: #{tpu_custom_call.1} parent=5 // pred_check
        _
      $region30: #{tpu_custom_call.1} parent=5 // pred_check_branch
        %165 = sbr.rel (%p162) target = $region32
      $region31: #{tpu_custom_call.1} parent=5 // pred_region
        %s166 = ssub.s32 %s13, 1
        // Predicated region
        $region33: #{tpu_custom_call.1} parent=31 // pred_check
          %p167 = pneg %p86
        $region34: #{tpu_custom_call.1} parent=31 // pred_check_branch
          %169 = sbr.rel (%p167) target = $region36
        $region35: #{tpu_custom_call.1} parent=31 // pred_region
          %170 = dma.done [#allocation3], 6016
        $region36: #{tpu_custom_call.1} parent=31 // pred_fallthru
          _
        %p171 = scmp.lt.s32.totalorder %s18, 1
        %s172 = scalar_select %p171, %s18, 1
        %s173 = smul.addr %s172, 2
        %s174 = smul.addr %s173, 8
        %s175 = scalar_lea.vmem %s0, %s174
        %p176 = pneg %p39
        %p177 = pneg %p36
        %p178 = scmp.lt.s32.totalorder %s18, 1
        %s179 = scalar_select %p178, %s18, 1
        %s180 = smul.addr %s179, 2
        %s181 = smul.addr %s180, 8
        %s182 = scalar_lea.vmem %s1, %s181
        %p183 = pneg %p65
        %p184 = pneg %p62
        %p185 = pneg %p86
        %p186 = pneg %p83
        %p187 = pneg %p112
        %p188 = pneg %p109
        %s189 = sand.u32 %s99, 1
        %s190 = scalar_lea.sflag [#allocation4], %s189
        %s191 = sand.u32 %s99, 1
        %s192 = scalar_lea.vmem [#allocation5], %s191
        %p193 = scmp.lt.s32.totalorder %s18, 1
        %s194 = scalar_select %p193, %s18, 1
        %s195 = smul.addr %s194, 2
        %s196 = smul.addr %s195, 8
        %s197 = scalar_lea.vmem %s0, %s196
        %p198 = scmp.lt.s32.totalorder %s18, 1
        %s199 = scalar_select %p198, %s18, 1
        %s200 = smul.addr %s199, 2
        %s201 = smul.addr %s200, 8
        %s202 = scalar_lea.vmem %s1, %s201
        %v203 = vld [vmem:[%s197] sm:$0xff]
        %v204 = vld [vmem:[%s197 + $0x8] sm:$0xff]
        %v205 = vld [vmem:[%s202] sm:$0xff]
        %v206 = vld [vmem:[%s202 + $0x8] sm:$0xff]
        %v207 = vld [vmem:[#allocation2] sm:$0xff]
        %v208 = vld [vmem:[#allocation2 + $0x8] sm:$0x1]
        %vm209 = vcmask 64512
        %v211 = vsel %vm209, %v205, 0
        %v214 = vsel %vm209, %v206, 0
        %216 = vmatprep.subr.mxu0 0.0
        %217 = vmatpush1.msra.mxu0 %v207
        %218 = vmatprep.subr.mxu0 0.0
        %219 = vmatpush1.msra.mxu0 0.0
        %220 = vmatprep.subr.mxu0 0.0
        %221 = vmatpush1.msra.mxu0 0.0
        %222 = vmatprep.subr.mxu0 0.0
        %223 = vmatpush1.msra.mxu0 0.0
        %224 = vmatprep.subr.mxu0 0.0
        %225 = vmatpush1.msra.mxu0 0.0
        %226 = vmatprep.subr.mxu0 0.0
        %227 = vmatpush1.msra.mxu0 0.0
        %228 = vmatprep.subr.mxu0 0.0
        %229 = vmatpush1.msra.mxu0 0.0
        %230 = vmatprep.subr.mxu0 0.0
        %231 = vmatpush1.msra.mxu0 0.0
        %232 = vmatprep.subr.mxu0 0.0
        %233 = vmatpush1.msra.mxu0 0.0
        %234 = vmatprep.subr.mxu0 0.0
        %235 = vmatpush1.msra.mxu0 0.0
        %236 = vmatprep.subr.mxu0 0.0
        %237 = vmatpush1.msra.mxu0 0.0
        %238 = vmatprep.subr.mxu0 0.0
        %239 = vmatpush1.msra.mxu0 0.0
        %240 = vmatprep.subr.mxu0 0.0
        %241 = vmatpush1.msra.mxu0 0.0
        %242 = vmatprep.subr.mxu0 0.0
        %243 = vmatpush1.msra.mxu0 0.0
        %244 = vmatprep.subr.mxu0 0.0
        %245 = vmatpush1.msra.mxu0 0.0
        %246 = vmatprep.subr.mxu0 0.0
        %247 = vmatpush1.msra.mxu0 0.0
        %248 = vmatprep.subr.mxu0 0.0
        %249 = vmatpush1.msra.mxu0 0.0
        %250 = vmatprep.subr.mxu0 0.0
        %251 = vmatpush1.msra.mxu0 0.0
        %252 = vmatprep.subr.mxu0 0.0
        %253 = vmatpush1.msra.mxu0 0.0
        %254 = vmatprep.subr.mxu0 0.0
        %255 = vmatpush1.msra.mxu0 0.0
        %256 = vmatprep.subr.mxu0 0.0
        %257 = vmatpush1.msra.mxu0 0.0
        %258 = vmatprep.subr.mxu0 0.0
        %259 = vmatpush1.msra.mxu0 0.0
        %260 = vmatprep.subr.mxu0 0.0
        %261 = vmatpush1.msra.mxu0 0.0
        %262 = vmatprep.subr.mxu0 0.0
        %263 = vmatpush1.msra.mxu0 0.0
        %264 = vmatprep.subr.mxu0 0.0
        %265 = vmatpush1.msra.mxu0 0.0
        %266 = vmatprep.subr.mxu0 0.0
        %267 = vmatpush1.msra.mxu0 0.0
        %268 = vmatprep.subr.mxu0 0.0
        %269 = vmatpush1.msra.mxu0 0.0
        %270 = vmatprep.subr.mxu0 0.0
        %271 = vmatpush1.msra.mxu0 0.0
        %272 = vmatprep.subr.mxu0 0.0
        %273 = vmatpush1.msra.mxu0 0.0
        %274 = vmatprep.subr.mxu0 0.0
        %275 = vmatpush1.msra.mxu0 0.0
        %276 = vmatprep.subr.mxu0 0.0
        %277 = vmatpush1.msra.mxu0 0.0
        %278 = vmatprep.subr.mxu0 0.0
        %279 = vmatpush1.msra.mxu0 0.0
        %280 = vmatprep.mubr.f32.mxu0 0.0
        %281 = vmatmul.mubr.f32.gmra.mrb[0].mxu0 %v211
        %v282 = vpop.f32.mrb[0].mxu0
        %v283 = vadd.f32 0.0, %v282
        %v284 = vpop.f32.mrb[0].mxu0
        %285 = vmatprep.mubr.f32.mxu0 0.0
        %286 = vmatmul.mubr.f32.gmra.mrb[0].mxu0 %v214
        %v287 = vpop.f32.mrb[0].mxu0
        %v288 = vadd.f32 0.0, %v287
        %v289 = vpop.f32.mrb[0].mxu0
        %290 = vdwg.mxu0
        %v291 = vlaneseq
        %v292 = vshrl.u32 %v291, 7
        %v293 = vsub.s32 0, %v292
        %v294 = vrot.slane %v208, %v293
        %vm295 = vcmask 130048
        %v297 = vsel %vm295, %v203, 0
        %v300 = vsel %vm295, %v204, 0
        %302 = vmatprep.subr.mxu0 0.0
        %303 = vmatpush1.msra.mxu0 %v283
        %304 = vmatprep.subr.mxu0 0.0
        %305 = vmatpush1.msra.mxu0 %v288
        %306 = vmatprep.subr.mxu0 0.0
        %307 = vmatpush1.msra.mxu0 0.0
        %308 = vmatprep.subr.mxu0 0.0
        %309 = vmatpush1.msra.mxu0 0.0
        %310 = vmatprep.subr.mxu0 0.0
        %311 = vmatpush1.msra.mxu0 0.0
        %312 = vmatprep.subr.mxu0 0.0
        %313 = vmatpush1.msra.mxu0 0.0
        %314 = vmatprep.subr.mxu0 0.0
        %315 = vmatpush1.msra.mxu0 0.0
        %316 = vmatprep.subr.mxu0 0.0
        %317 = vmatpush1.msra.mxu0 0.0
        %318 = vmatprep.subr.mxu0 0.0
        %319 = vmatpush1.msra.mxu0 0.0
        %320 = vmatprep.subr.mxu0 0.0
        %321 = vmatpush1.msra.mxu0 0.0
        %322 = vmatprep.subr.mxu0 0.0
        %323 = vmatpush1.msra.mxu0 0.0
        %324 = vmatprep.subr.mxu0 0.0
        %325 = vmatpush1.msra.mxu0 0.0
        %326 = vmatprep.subr.mxu0 0.0
        %327 = vmatpush1.msra.mxu0 0.0
        %328 = vmatprep.subr.mxu0 0.0
        %329 = vmatpush1.msra.mxu0 0.0
        %330 = vmatprep.subr.mxu0 0.0
        %331 = vmatpush1.msra.mxu0 0.0
        %332 = vmatprep.subr.mxu0 0.0
        %333 = vmatpush1.msra.mxu0 0.0
        %334 = vmatprep.subr.mxu0 0.0
        %335 = vmatpush1.msra.mxu0 0.0
        %336 = vmatprep.subr.mxu0 0.0
        %337 = vmatpush1.msra.mxu0 0.0
        %338 = vmatprep.subr.mxu0 0.0
        %339 = vmatpush1.msra.mxu0 0.0
        %340 = vmatprep.subr.mxu0 0.0
        %341 = vmatpush1.msra.mxu0 0.0
        %342 = vmatprep.subr.mxu0 0.0
        %343 = vmatpush1.msra.mxu0 0.0
        %344 = vmatprep.subr.mxu0 0.0
        %345 = vmatpush1.msra.mxu0 0.0
        %346 = vmatprep.subr.mxu0 0.0
        %347 = vmatpush1.msra.mxu0 0.0
        %348 = vmatprep.subr.mxu0 0.0
        %349 = vmatpush1.msra.mxu0 0.0
        %350 = vmatprep.subr.mxu0 0.0
        %351 = vmatpush1.msra.mxu0 0.0
        %352 = vmatprep.subr.mxu0 0.0
        %353 = vmatpush1.msra.mxu0 0.0
        %354 = vmatprep.subr.mxu0 0.0
        %355 = vmatpush1.msra.mxu0 0.0
        %356 = vmatprep.subr.mxu0 0.0
        %357 = vmatpush1.msra.mxu0 0.0
        %358 = vmatprep.subr.mxu0 0.0
        %359 = vmatpush1.msra.mxu0 0.0
        %360 = vmatprep.subr.mxu0 0.0
        %361 = vmatpush1.msra.mxu0 0.0
        %362 = vmatprep.subr.mxu0 0.0
        %363 = vmatpush1.msra.mxu0 0.0
        %364 = vmatprep.subr.mxu0 0.0
        %365 = vmatpush1.msra.mxu0 0.0
        %366 = vmatprep.mubr.f32.mxu0 0.0
        %367 = vmatmul.mubr.f32.gmra.mrb[0].mxu0 %v297
        %v368 = vpop.f32.mrb[0].mxu0
        %v369 = vadd.f32 %v294, %v368
        %v370 = vpop.f32.mrb[0].mxu0
        %371 = vmatprep.mubr.f32.mxu0 0.0
        %372 = vmatmul.mubr.f32.gmra.mrb[0].mxu0 %v300
        %v373 = vpop.f32.mrb[0].mxu0
        %v374 = vadd.f32 %v294, %v373
        %v375 = vpop.f32.mrb[0].mxu0
        %376 = vdwg.mxu0
        %v377 = vld [vmem:[#allocation2 + $0x10] sm:$0xff]
        %v378 = vld [vmem:[#allocation2 + $0x18] sm:$0xff]
        %v379 = vld [vmem:[#allocation2 + $0x20] sm:$0xff]
        %v380 = vld [vmem:[#allocation2 + $0x28] sm:$0xff]
        %v381 = vld [vmem:[#allocation2 + $0x30] sm:$0x1]
        %vm382 = vcmask 261120
        %v384 = vsel %vm382, %v369, 0
        %v387 = vsel %vm382, %v374, 0
        %389 = vmatprep.subr.mxu0 0.0
        %390 = vmatpush1.msra.mxu0 %v377
        %391 = vmatprep.subr.mxu0 0.0
        %392 = vmatpush1.msra.mxu0 %v378
        %393 = vmatprep.subr.mxu0 0.0
        %394 = vmatpush1.msra.mxu0 %v379
        %395 = vmatprep.subr.mxu0 0.0
        %396 = vmatpush1.msra.mxu0 %v380
        %397 = vmatprep.subr.mxu0 0.0
        %398 = vmatpush1.msra.mxu0 0.0
        %399 = vmatprep.subr.mxu0 0.0
        %400 = vmatpush1.msra.mxu0 0.0
        %401 = vmatprep.subr.mxu0 0.0
        %402 = vmatpush1.msra.mxu0 0.0
        %403 = vmatprep.subr.mxu0 0.0
        %404 = vmatpush1.msra.mxu0 0.0
        %405 = vmatprep.subr.mxu0 0.0
        %406 = vmatpush1.msra.mxu0 0.0
        %407 = vmatprep.subr.mxu0 0.0
        %408 = vmatpush1.msra.mxu0 0.0
        %409 = vmatprep.subr.mxu0 0.0
        %410 = vmatpush1.msra.mxu0 0.0
        %411 = vmatprep.subr.mxu0 0.0
        %412 = vmatpush1.msra.mxu0 0.0
        %413 = vmatprep.subr.mxu0 0.0
        %414 = vmatpush1.msra.mxu0 0.0
        %415 = vmatprep.subr.mxu0 0.0
        %416 = vmatpush1.msra.mxu0 0.0
        %417 = vmatprep.subr.mxu0 0.0
        %418 = vmatpush1.msra.mxu0 0.0
        %419 = vmatprep.subr.mxu0 0.0
        %420 = vmatpush1.msra.mxu0 0.0
        %421 = vmatprep.subr.mxu0 0.0
        %422 = vmatpush1.msra.mxu0 0.0
        %423 = vmatprep.subr.mxu0 0.0
        %424 = vmatpush1.msra.mxu0 0.0
        %425 = vmatprep.subr.mxu0 0.0
        %426 = vmatpush1.msra.mxu0 0.0
        %427 = vmatprep.subr.mxu0 0.0
        %428 = vmatpush1.msra.mxu0 0.0
        %429 = vmatprep.subr.mxu0 0.0
        %430 = vmatpush1.msra.mxu0 0.0
        %431 = vmatprep.subr.mxu0 0.0
        %432 = vmatpush1.msra.mxu0 0.0
        %433 = vmatprep.subr.mxu0 0.0
        %434 = vmatpush1.msra.mxu0 0.0
        %435 = vmatprep.subr.mxu0 0.0
        %436 = vmatpush1.msra.mxu0 0.0
        %437 = vmatprep.subr.mxu0 0.0
        %438 = vmatpush1.msra.mxu0 0.0
        %439 = vmatprep.subr.mxu0 0.0
        %440 = vmatpush1.msra.mxu0 0.0
        %441 = vmatprep.subr.mxu0 0.0
        %442 = vmatpush1.msra.mxu0 0.0
        %443 = vmatprep.subr.mxu0 0.0
        %444 = vmatpush1.msra.mxu0 0.0
        %445 = vmatprep.subr.mxu0 0.0
        %446 = vmatpush1.msra.mxu0 0.0
        %447 = vmatprep.subr.mxu0 0.0
        %448 = vmatpush1.msra.mxu0 0.0
        %449 = vmatprep.subr.mxu0 0.0
        %450 = vmatpush1.msra.mxu0 0.0
        %451 = vmatprep.subr.mxu0 0.0
        %452 = vmatpush1.msra.mxu0 0.0
        %453 = vmatprep.mubr.f32.mxu0 0.0
        %454 = vmatmul.mubr.f32.gmra.mrb[0].mxu0 %v384
        %v455 = vpop.f32.mrb[0].mxu0
        %v456 = vadd.f32 0.0, %v455
        %v457 = vpop.f32.mrb[0].mxu0
        %458 = vmatprep.mubr.f32.mxu0 0.0
        %459 = vmatmul.mubr.f32.gmra.mrb[0].mxu0 %v387
        %v460 = vpop.f32.mrb[0].mxu0
        %v461 = vadd.f32 0.0, %v460
        %v462 = vpop.f32.mrb[0].mxu0
        %463 = vdwg.mxu0
        %v464 = vlaneseq
        %v465 = vshrl.u32 %v464, 7
        %v466 = vsub.s32 0, %v465
        %v467 = vrot.slane %v381, %v466
        %468 = vmatprep.subr.mxu0 0.0
        %469 = vmatpush1.msra.mxu0 %v456
        %470 = vmatprep.subr.mxu0 0.0
        %471 = vmatpush1.msra.mxu0 %v461
        %472 = vmatprep.subr.mxu0 0.0
        %473 = vmatpush1.msra.mxu0 0.0
        %474 = vmatprep.subr.mxu0 0.0
        %475 = vmatpush1.msra.mxu0 0.0
        %476 = vmatprep.subr.mxu0 0.0
        %477 = vmatpush1.msra.mxu0 0.0
        %478 = vmatprep.subr.mxu0 0.0
        %479 = vmatpush1.msra.mxu0 0.0
        %480 = vmatprep.subr.mxu0 0.0
        %481 = vmatpush1.msra.mxu0 0.0
        %482 = vmatprep.subr.mxu0 0.0
        %483 = vmatpush1.msra.mxu0 0.0
        %484 = vmatprep.subr.mxu0 0.0
        %485 = vmatpush1.msra.mxu0 0.0
        %486 = vmatprep.subr.mxu0 0.0
        %487 = vmatpush1.msra.mxu0 0.0
        %488 = vmatprep.subr.mxu0 0.0
        %489 = vmatpush1.msra.mxu0 0.0
        %490 = vmatprep.subr.mxu0 0.0
        %491 = vmatpush1.msra.mxu0 0.0
        %492 = vmatprep.subr.mxu0 0.0
        %493 = vmatpush1.msra.mxu0 0.0
        %494 = vmatprep.subr.mxu0 0.0
        %495 = vmatpush1.msra.mxu0 0.0
        %496 = vmatprep.subr.mxu0 0.0
        %497 = vmatpush1.msra.mxu0 0.0
        %498 = vmatprep.subr.mxu0 0.0
        %499 = vmatpush1.msra.mxu0 0.0
        %500 = vmatprep.subr.mxu0 0.0
        %501 = vmatpush1.msra.mxu0 0.0
        %502 = vmatprep.subr.mxu0 0.0
        %503 = vmatpush1.msra.mxu0 0.0
        %504 = vmatprep.subr.mxu0 0.0
        %505 = vmatpush1.msra.mxu0 0.0
        %506 = vmatprep.subr.mxu0 0.0
        %507 = vmatpush1.msra.mxu0 0.0
        %508 = vmatprep.subr.mxu0 0.0
        %509 = vmatpush1.msra.mxu0 0.0
        %510 = vmatprep.subr.mxu0 0.0
        %511 = vmatpush1.msra.mxu0 0.0
        %512 = vmatprep.subr.mxu0 0.0
        %513 = vmatpush1.msra.mxu0 0.0
        %514 = vmatprep.subr.mxu0 0.0
        %515 = vmatpush1.msra.mxu0 0.0
        %516 = vmatprep.subr.mxu0 0.0
        %517 = vmatpush1.msra.mxu0 0.0
        %518 = vmatprep.subr.mxu0 0.0
        %519 = vmatpush1.msra.mxu0 0.0
        %520 = vmatprep.subr.mxu0 0.0
        %521 = vmatpush1.msra.mxu0 0.0
        %522 = vmatprep.subr.mxu0 0.0
        %523 = vmatpush1.msra.mxu0 0.0
        %524 = vmatprep.subr.mxu0 0.0
        %525 = vmatpush1.msra.mxu0 0.0
        %526 = vmatprep.subr.mxu0 0.0
        %527 = vmatpush1.msra.mxu0 0.0
        %528 = vmatprep.subr.mxu0 0.0
        %529 = vmatpush1.msra.mxu0 0.0
        %530 = vmatprep.subr.mxu0 0.0
        %531 = vmatpush1.msra.mxu0 0.0
        %532 = vmatprep.mubr.f32.mxu0 0.0
        %533 = vmatmul.mubr.f32.gmra.mrb[0].mxu0 %v297
        %v534 = vpop.f32.mrb[0].mxu0
        %v535 = vadd.f32 %v467, %v534
        %v536 = vpop.f32.mrb[0].mxu0
        %537 = vmatprep.mubr.f32.mxu0 0.0
        %538 = vmatmul.mubr.f32.gmra.mrb[0].mxu0 %v300
        %v539 = vpop.f32.mrb[0].mxu0
        %v540 = vadd.f32 %v467, %v539
        %v541 = vpop.f32.mrb[0].mxu0
        %542 = vdwg.mxu0
        %v543 = vld [vmem:[#allocation2 + $0x38] sm:$0xff]
        %v544 = vld [vmem:[#allocation2 + $0x40] sm:$0xff]
        %v545 = vld [vmem:[#allocation2 + $0x48] sm:$0xff]
        %v546 = vld [vmem:[#allocation2 + $0x50] sm:$0xff]
        %v547 = vld [vmem:[#allocation2 + $0x58] sm:$0x1]
        %v549 = vsel %vm382, %v535, 0
        %v552 = vsel %vm382, %v540, 0
        %554 = vmatprep.subr.mxu0 0.0
        %555 = vmatpush1.msra.mxu0 %v543
        %556 = vmatprep.subr.mxu0 0.0
        %557 = vmatpush1.msra.mxu0 %v544
        %558 = vmatprep.subr.mxu0 0.0
        %559 = vmatpush1.msra.mxu0 %v545
        %560 = vmatprep.subr.mxu0 0.0
        %561 = vmatpush1.msra.mxu0 %v546
        %562 = vmatprep.subr.mxu0 0.0
        %563 = vmatpush1.msra.mxu0 0.0
        %564 = vmatprep.subr.mxu0 0.0
        %565 = vmatpush1.msra.mxu0 0.0
        %566 = vmatprep.subr.mxu0 0.0
        %567 = vmatpush1.msra.mxu0 0.0
        %568 = vmatprep.subr.mxu0 0.0
        %569 = vmatpush1.msra.mxu0 0.0
        %570 = vmatprep.subr.mxu0 0.0
        %571 = vmatpush1.msra.mxu0 0.0
        %572 = vmatprep.subr.mxu0 0.0
        %573 = vmatpush1.msra.mxu0 0.0
        %574 = vmatprep.subr.mxu0 0.0
        %575 = vmatpush1.msra.mxu0 0.0
        %576 = vmatprep.subr.mxu0 0.0
        %577 = vmatpush1.msra.mxu0 0.0
        %578 = vmatprep.subr.mxu0 0.0
        %579 = vmatpush1.msra.mxu0 0.0
        %580 = vmatprep.subr.mxu0 0.0
        %581 = vmatpush1.msra.mxu0 0.0
        %582 = vmatprep.subr.mxu0 0.0
        %583 = vmatpush1.msra.mxu0 0.0
        %584 = vmatprep.subr.mxu0 0.0
        %585 = vmatpush1.msra.mxu0 0.0
        %586 = vmatprep.subr.mxu0 0.0
        %587 = vmatpush1.msra.mxu0 0.0
        %588 = vmatprep.subr.mxu0 0.0
        %589 = vmatpush1.msra.mxu0 0.0
        %590 = vmatprep.subr.mxu0 0.0
        %591 = vmatpush1.msra.mxu0 0.0
        %592 = vmatprep.subr.mxu0 0.0
        %593 = vmatpush1.msra.mxu0 0.0
        %594 = vmatprep.subr.mxu0 0.0
        %595 = vmatpush1.msra.mxu0 0.0
        %596 = vmatprep.subr.mxu0 0.0
        %597 = vmatpush1.msra.mxu0 0.0
        %598 = vmatprep.subr.mxu0 0.0
        %599 = vmatpush1.msra.mxu0 0.0
        %600 = vmatprep.subr.mxu0 0.0
        %601 = vmatpush1.msra.mxu0 0.0
        %602 = vmatprep.subr.mxu0 0.0
        %603 = vmatpush1.msra.mxu0 0.0
        %604 = vmatprep.subr.mxu0 0.0
        %605 = vmatpush1.msra.mxu0 0.0
        %606 = vmatprep.subr.mxu0 0.0
        %607 = vmatpush1.msra.mxu0 0.0
        %608 = vmatprep.subr.mxu0 0.0
        %609 = vmatpush1.msra.mxu0 0.0
        %610 = vmatprep.subr.mxu0 0.0
        %611 = vmatpush1.msra.mxu0 0.0
        %612 = vmatprep.subr.mxu0 0.0
        %613 = vmatpush1.msra.mxu0 0.0
        %614 = vmatprep.subr.mxu0 0.0
        %615 = vmatpush1.msra.mxu0 0.0
        %616 = vmatprep.subr.mxu0 0.0
        %617 = vmatpush1.msra.mxu0 0.0
        %618 = vmatprep.mubr.f32.mxu0 0.0
        %619 = vmatmul.mubr.f32.gmra.mrb[0].mxu0 %v549
        %v620 = vpop.f32.mrb[0].mxu0
        %v621 = vadd.f32 0.0, %v620
        %v622 = vpop.f32.mrb[0].mxu0
        %623 = vmatprep.mubr.f32.mxu0 0.0
        %624 = vmatmul.mubr.f32.gmra.mrb[0].mxu0 %v552
        %v625 = vpop.f32.mrb[0].mxu0
        %v626 = vadd.f32 0.0, %v625
        %v627 = vpop.f32.mrb[0].mxu0
        %628 = vdwg.mxu0
        %v629 = vlaneseq
        %v630 = vshrl.u32 %v629, 7
        %v631 = vsub.s32 0, %v630
        %v632 = vrot.slane %v547, %v631
        %633 = vmatprep.subr.mxu0 0.0
        %634 = vmatpush1.msra.mxu0 %v621
        %635 = vmatprep.subr.mxu0 0.0
        %636 = vmatpush1.msra.mxu0 %v626
        %637 = vmatprep.subr.mxu0 0.0
        %638 = vmatpush1.msra.mxu0 0.0
        %639 = vmatprep.subr.mxu0 0.0
        %640 = vmatpush1.msra.mxu0 0.0
        %641 = vmatprep.subr.mxu0 0.0
        %642 = vmatpush1.msra.mxu0 0.0
        %643 = vmatprep.subr.mxu0 0.0
        %644 = vmatpush1.msra.mxu0 0.0
        %645 = vmatprep.subr.mxu0 0.0
        %646 = vmatpush1.msra.mxu0 0.0
        %647 = vmatprep.subr.mxu0 0.0
        %648 = vmatpush1.msra.mxu0 0.0
        %649 = vmatprep.subr.mxu0 0.0
        %650 = vmatpush1.msra.mxu0 0.0
        %651 = vmatprep.subr.mxu0 0.0
        %652 = vmatpush1.msra.mxu0 0.0
        %653 = vmatprep.subr.mxu0 0.0
        %654 = vmatpush1.msra.mxu0 0.0
        %655 = vmatprep.subr.mxu0 0.0
        %656 = vmatpush1.msra.mxu0 0.0
        %657 = vmatprep.subr.mxu0 0.0
        %658 = vmatpush1.msra.mxu0 0.0
        %659 = vmatprep.subr.mxu0 0.0
        %660 = vmatpush1.msra.mxu0 0.0
        %661 = vmatprep.subr.mxu0 0.0
        %662 = vmatpush1.msra.mxu0 0.0
        %663 = vmatprep.subr.mxu0 0.0
        %664 = vmatpush1.msra.mxu0 0.0
        %665 = vmatprep.subr.mxu0 0.0
        %666 = vmatpush1.msra.mxu0 0.0
        %667 = vmatprep.subr.mxu0 0.0
        %668 = vmatpush1.msra.mxu0 0.0
        %669 = vmatprep.subr.mxu0 0.0
        %670 = vmatpush1.msra.mxu0 0.0
        %671 = vmatprep.subr.mxu0 0.0
        %672 = vmatpush1.msra.mxu0 0.0
        %673 = vmatprep.subr.mxu0 0.0
        %674 = vmatpush1.msra.mxu0 0.0
        %675 = vmatprep.subr.mxu0 0.0
        %676 = vmatpush1.msra.mxu0 0.0
        %677 = vmatprep.subr.mxu0 0.0
        %678 = vmatpush1.msra.mxu0 0.0
        %679 = vmatprep.subr.mxu0 0.0
        %680 = vmatpush1.msra.mxu0 0.0
        %681 = vmatprep.subr.mxu0 0.0
        %682 = vmatpush1.msra.mxu0 0.0
        %683 = vmatprep.subr.mxu0 0.0
        %684 = vmatpush1.msra.mxu0 0.0
        %685 = vmatprep.subr.mxu0 0.0
        %686 = vmatpush1.msra.mxu0 0.0
        %687 = vmatprep.subr.mxu0 0.0
        %688 = vmatpush1.msra.mxu0 0.0
        %689 = vmatprep.subr.mxu0 0.0
        %690 = vmatpush1.msra.mxu0 0.0
        %691 = vmatprep.subr.mxu0 0.0
        %692 = vmatpush1.msra.mxu0 0.0
        %693 = vmatprep.subr.mxu0 0.0
        %694 = vmatpush1.msra.mxu0 0.0
        %695 = vmatprep.subr.mxu0 0.0
        %696 = vmatpush1.msra.mxu0 0.0
        %697 = vmatprep.mubr.f32.mxu0 0.0
        %698 = vmatmul.mubr.f32.gmra.mrb[0].mxu0 %v297
        %v699 = vpop.f32.mrb[0].mxu0
        %v700 = vadd.f32 %v632, %v699
        %v701 = vpop.f32.mrb[0].mxu0
        %702 = vmatprep.mubr.f32.mxu0 0.0
        %703 = vmatmul.mubr.f32.gmra.mrb[0].mxu0 %v300
        %v704 = vpop.f32.mrb[0].mxu0
        %v705 = vadd.f32 %v632, %v704
        %v706 = vpop.f32.mrb[0].mxu0
        %707 = vdwg.mxu0
        %v708 = vld [vmem:[#allocation2 + $0x60] sm:$0x7]
        %v709 = vlaneseq
        %v710 = vshrl.u32 %v709, 7
        %v711 = vsub.s32 0, %v710
        %v712 = vrot.slane %v708, %v711
        %v713 = vmul.f32 %v369, %v712
        %v714 = vmul.f32 %v374, %v712
        %v715 = vsel %vm382, %v713, 0.0
        %716 = vadd.xlane.f32.xlu0 %v715
        %v717 = vpop.xlane.xlu0 %716
        %v718 = vsel %vm382, %v714, 0.0
        %719 = vadd.xlane.f32.xlu0 %v718
        %v720 = vpop.xlane.xlu0 %719
        %v721 = vadd.f32 %v717, 0.0
        %v722 = vadd.f32 %v720, 0.0
        %v723 = vlaneseq
        %v724 = vshrl.u32 %v723, 7
        %v725 = vsub.s32 1, %v724
        %v726 = vrot.slane %v708, %v725
        %v727 = vmul.f32 %v535, %v726
        %v728 = vmul.f32 %v540, %v726
        %v729 = vsel %vm382, %v727, 0.0
        %730 = vadd.xlane.f32.xlu0 %v729
        %v731 = vpop.xlane.xlu0 %730
        %v732 = vsel %vm382, %v728, 0.0
        %733 = vadd.xlane.f32.xlu0 %v732
        %v734 = vpop.xlane.xlu0 %733
        %v735 = vadd.f32 %v721, %v731
        %v736 = vadd.f32 %v722, %v734
        %v737 = vlaneseq
        %v738 = vshrl.u32 %v737, 7
        %v739 = vsub.s32 2, %v738
        %v740 = vrot.slane %v708, %v739
        %v741 = vmul.f32 %v700, %v740
        %v742 = vmul.f32 %v705, %v740
        %v743 = vsel %vm382, %v741, 0.0
        %744 = vadd.xlane.f32.xlu0 %v743
        %v745 = vpop.xlane.xlu0 %744
        %v746 = vsel %vm382, %v742, 0.0
        %747 = vadd.xlane.f32.xlu0 %v746
        %v748 = vpop.xlane.xlu0 %747
        %v749 = vadd.f32 %v735, %v745
        %v750 = vadd.f32 %v736, %v748
        %v751 = vld [vmem:[#allocation2 + $0x68] sm:$0x1]
        %v752 = vmul.f32 %v203, %v749
        %v753 = vmul.f32 %v204, %v750
        %v754 = vsel %vm295, %v752, 0.0
        %v755 = vsel %vm295, %v753, 0.0
        %v756 = vadd.f32 %v754, %v755
        %v757 = vrot.slane %v756, 4
        %v758 = vadd.f32 %v756, %v757
        %v759 = vrot.slane %v758, 2
        %v760 = vadd.f32 %v758, %v759
        %v761 = vrot.slane %v760, 1
        %v762 = vadd.f32 %v760, %v761
        %764 = vset.pattern.permute.xlu0 0
        %765 = vperm.xlu0 %764, %v751
        %v766 = vpop.permute.xlu0 %765
        %v768 = vadd.f32 %v762, %v766
        %v769 = vlaneseq
        %v770 = vshrl.u32 %v769, 7
        %v771 = vadd.s32 %v770, 8
        %v772 = vlaneseq
        %v773 = vand.u32 %v772, 127
        %vm774 = vcmp.eq.s32.totalorder %v770, %v773
        %vm775 = vcmp.eq.s32.totalorder %v771, %v773
        %v776 = vlaneseq
        %v777 = vshrl.u32 %v776, 7
        %v778 = vsub.s32 0, %v777
        %v779 = vrot.slane %v768, %v778
        %v780 = vsel %vm774, %v779, 0.0
        %v781 = vsel %vm775, %v779, 0.0
        %v782 = vsel %vm295, %v780, 0.0
        %783 = vadd.xlane.f32.xlu0 %v782
        %v784 = vpop.xlane.xlu0 %783
        %v785 = vsel %vm295, %v781, 0.0
        %786 = vadd.xlane.f32.xlu0 %v785
        %v787 = vpop.xlane.xlu0 %786
        %vm788 = vcmp.gt.f32.partialorder %v779, %v784
        %vm789 = vcmp.gt.f32.partialorder %v779, %v787
        %vm790 = vcmp.eq.f32.partialorder %v779, %v784
        %vm791 = vcmp.eq.f32.partialorder %v779, %v787
        %vm792 = vcmp.lt.s32.totalorder %v773, %v770
        %vm793 = vcmp.lt.s32.totalorder %v773, %v771
        %vm794 = vmand %vm790, %vm792
        %vm795 = vmand %vm791, %vm793
        %vm796 = vmor %vm788, %vm794
        %vm797 = vmor %vm789, %vm795
        %v798 = vsel %vm796, 1, 0
        %v799 = vsel %vm797, 1, 0
        %v800 = vcvt.s32.f32 %v798
        %v801 = vcvt.s32.f32 %v799
        %v802 = vsel %vm295, %v800, 0.0
        %803 = vadd.xlane.f32.xlu0 %v802
        %v804 = vpop.xlane.xlu0 %803
        %v805 = vsel %vm295, %v801, 0.0
        %806 = vadd.xlane.f32.xlu0 %v805
        %v807 = vpop.xlane.xlu0 %806
        %vm808 = vcmp.lt.f32.partialorder %v804, 8.0
        %vm809 = vcmp.lt.f32.partialorder %v807, 8.0
        %v810 = vsel %vm808, 1, 0
        %v811 = vsel %vm809, 1, 0
        %v812 = vcvt.s32.f32 %v810
        %v813 = vcvt.s32.f32 %v811
        %v814 = vtanh.pop %v784
        %v815 = vtanh.pop %v787
        %v816 = vld [vmem:[#allocation2 + $0x70] sm:$0xff]
        %v817 = vld [vmem:[#allocation2 + $0x78] sm:$0xff]
        %v818 = vld [vmem:[#allocation2 + $0x80] sm:$0xff]
        %v819 = vld [vmem:[#allocation2 + $0x88] sm:$0xff]
        %v820 = vld [vmem:[#allocation2 + $0x90] sm:$0xff]
        %v821 = vld [vmem:[#allocation2 + $0x98] sm:$0xff]
        %v822 = vld [vmem:[#allocation2 + $0xa0] sm:$0xff]
        %v823 = vld [vmem:[#allocation2 + $0xa8] sm:$0xff]
        %v824 = vld [vmem:[#allocation2 + $0xb0] sm:$0xff]
        %v825 = vld [vmem:[#allocation2 + $0xb8] sm:$0xff]
        %v826 = vld [vmem:[#allocation2 + $0xc0] sm:$0xff]
        %v827 = vld [vmem:[#allocation2 + $0xc8] sm:$0xff]
        %v828 = vld [vmem:[#allocation2 + $0xd0] sm:$0xff]
        %v829 = vld [vmem:[#allocation2 + $0xd8] sm:$0xff]
        %v830 = vld [vmem:[#allocation2 + $0xe0] sm:$0xff]
        %v831 = vld [vmem:[#allocation2 + $0xe8] sm:$0xff]
        %v832 = vld [vmem:[#allocation2 + $0xf0] sm:$0xff]
        %v833 = vld [vmem:[#allocation2 + $0xf8] sm:$0xff]
        %v834 = vld [vmem:[#allocation2 + $0x100] sm:$0xff]
        %v835 = vld [vmem:[#allocation2 + $0x108] sm:$0xff]
        %v836 = vld [vmem:[#allocation2 + $0x110] sm:$0xff]
        %v837 = vld [vmem:[#allocation2 + $0x118] sm:$0xff]
        %v838 = vld [vmem:[#allocation2 + $0x120] sm:$0xff]
        %v839 = vld [vmem:[#allocation2 + $0x128] sm:$0xff]
        %v840 = vld [vmem:[#allocation2 + $0x130] sm:$0x1]
        %v841 = vmul.f32 %v369, %v814
        %v842 = vmul.f32 %v374, %v815
        %v843 = vmul.f32 %v841, %v812
        %v844 = vmul.f32 %v842, %v813
        %v845 = vsel %vm382, %v843, 0.0
        %v846 = vsel %vm382, %v844, 0.0
        %v847 = vadd.f32 %v845, %v846
        %v848 = vrot.slane %v847, 4
        %v849 = vadd.f32 %v847, %v848
        %v850 = vrot.slane %v849, 2
        %v851 = vadd.f32 %v849, %v850
        %v852 = vrot.slane %v851, 1
        %v853 = vadd.f32 %v851, %v852
        %v854 = vmul.f32 %v853, 0.125
        %vm855 = vcmp.eq.s32.totalorder %v810, 1
        %vm856 = vcmp.eq.s32.totalorder %v811, 1
        %v857 = vsel %vm855, %v841, -inf
        %v858 = vsel %vm856, %v842, -inf
        %v859 = vsel %vm382, %v857, -inf
        %v860 = vsel %vm382, %v858, -inf
        %v861 = vmax.f32 %v859, %v860
        %v862 = vrot.slane %v861, 4
        %v863 = vmax.f32 %v861, %v862
        %v864 = vrot.slane %v863, 2
        %v865 = vmax.f32 %v863, %v864
        %v866 = vrot.slane %v865, 1
        %v867 = vmax.f32 %v865, %v866
        %v869 = vsel %vm382, %v854, 0
        %871 = vmatprep.subr.mxu0 0.0
        %872 = vmatpush1.msra.mxu0 %v816
        %873 = vmatprep.subr.mxu0 0.0
        %874 = vmatpush1.msra.mxu0 %v817
        %875 = vmatprep.subr.mxu0 0.0
        %876 = vmatpush1.msra.mxu0 %v818
        %877 = vmatprep.subr.mxu0 0.0
        %878 = vmatpush1.msra.mxu0 %v819
        %879 = vmatprep.subr.mxu0 0.0
        %880 = vmatpush1.msra.mxu0 0.0
        %881 = vmatprep.subr.mxu0 0.0
        %882 = vmatpush1.msra.mxu0 0.0
        %883 = vmatprep.subr.mxu0 0.0
        %884 = vmatpush1.msra.mxu0 0.0
        %885 = vmatprep.subr.mxu0 0.0
        %886 = vmatpush1.msra.mxu0 0.0
        %887 = vmatprep.subr.mxu0 0.0
        %888 = vmatpush1.msra.mxu0 0.0
        %889 = vmatprep.subr.mxu0 0.0
        %890 = vmatpush1.msra.mxu0 0.0
        %891 = vmatprep.subr.mxu0 0.0
        %892 = vmatpush1.msra.mxu0 0.0
        %893 = vmatprep.subr.mxu0 0.0
        %894 = vmatpush1.msra.mxu0 0.0
        %895 = vmatprep.subr.mxu0 0.0
        %896 = vmatpush1.msra.mxu0 0.0
        %897 = vmatprep.subr.mxu0 0.0
        %898 = vmatpush1.msra.mxu0 0.0
        %899 = vmatprep.subr.mxu0 0.0
        %900 = vmatpush1.msra.mxu0 0.0
        %901 = vmatprep.subr.mxu0 0.0
        %902 = vmatpush1.msra.mxu0 0.0
        %903 = vmatprep.subr.mxu0 0.0
        %904 = vmatpush1.msra.mxu0 0.0
        %905 = vmatprep.subr.mxu0 0.0
        %906 = vmatpush1.msra.mxu0 0.0
        %907 = vmatprep.subr.mxu0 0.0
        %908 = vmatpush1.msra.mxu0 0.0
        %909 = vmatprep.subr.mxu0 0.0
        %910 = vmatpush1.msra.mxu0 0.0
        %911 = vmatprep.subr.mxu0 0.0
        %912 = vmatpush1.msra.mxu0 0.0
        %913 = vmatprep.subr.mxu0 0.0
        %914 = vmatpush1.msra.mxu0 0.0
        %915 = vmatprep.subr.mxu0 0.0
        %916 = vmatpush1.msra.mxu0 0.0
        %917 = vmatprep.subr.mxu0 0.0
        %918 = vmatpush1.msra.mxu0 0.0
        %919 = vmatprep.subr.mxu0 0.0
        %920 = vmatpush1.msra.mxu0 0.0
        %921 = vmatprep.subr.mxu0 0.0
        %922 = vmatpush1.msra.mxu0 0.0
        %923 = vmatprep.subr.mxu0 0.0
        %924 = vmatpush1.msra.mxu0 0.0
        %925 = vmatprep.subr.mxu0 0.0
        %926 = vmatpush1.msra.mxu0 0.0
        %927 = vmatprep.subr.mxu0 0.0
        %928 = vmatpush1.msra.mxu0 0.0
        %929 = vmatprep.subr.mxu0 0.0
        %930 = vmatpush1.msra.mxu0 0.0
        %931 = vmatprep.subr.mxu0 0.0
        %932 = vmatpush1.msra.mxu0 0.0
        %933 = vmatprep.subr.mxu0 0.0
        %934 = vmatpush1.msra.mxu0 0.0
        %935 = vmatprep.mubr.f32.mxu0 0.0
        %936 = vmatmul.mubr.f32.gmra.mrb[0].mxu0 %v869
        %v937 = vpop.f32.mrb[0].mxu0
        %v938 = vadd.f32 0.0, %v937
        %v939 = vpop.f32.mrb[0].mxu0
        %940 = vdwg.mxu0
        %v941 = vadd.f32 %v840, %v938
        %v943 = vsel %vm382, %v867, 0
        %945 = vmatprep.subr.mxu0 0.0
        %946 = vmatpush1.msra.mxu0 %v828
        %947 = vmatprep.subr.mxu0 0.0
        %948 = vmatpush1.msra.mxu0 %v829
        %949 = vmatprep.subr.mxu0 0.0
        %950 = vmatpush1.msra.mxu0 %v830
        %951 = vmatprep.subr.mxu0 0.0
        %952 = vmatpush1.msra.mxu0 %v831
        %953 = vmatprep.subr.mxu0 0.0
        %954 = vmatpush1.msra.mxu0 0.0
        %955 = vmatprep.subr.mxu0 0.0
        %956 = vmatpush1.msra.mxu0 0.0
        %957 = vmatprep.subr.mxu0 0.0
        %958 = vmatpush1.msra.mxu0 0.0
        %959 = vmatprep.subr.mxu0 0.0
        %960 = vmatpush1.msra.mxu0 0.0
        %961 = vmatprep.subr.mxu0 0.0
        %962 = vmatpush1.msra.mxu0 0.0
        %963 = vmatprep.subr.mxu0 0.0
        %964 = vmatpush1.msra.mxu0 0.0
        %965 = vmatprep.subr.mxu0 0.0
        %966 = vmatpush1.msra.mxu0 0.0
        %967 = vmatprep.subr.mxu0 0.0
        %968 = vmatpush1.msra.mxu0 0.0
        %969 = vmatprep.subr.mxu0 0.0
        %970 = vmatpush1.msra.mxu0 0.0
        %971 = vmatprep.subr.mxu0 0.0
        %972 = vmatpush1.msra.mxu0 0.0
        %973 = vmatprep.subr.mxu0 0.0
        %974 = vmatpush1.msra.mxu0 0.0
        %975 = vmatprep.subr.mxu0 0.0
        %976 = vmatpush1.msra.mxu0 0.0
        %977 = vmatprep.subr.mxu0 0.0
        %978 = vmatpush1.msra.mxu0 0.0
        %979 = vmatprep.subr.mxu0 0.0
        %980 = vmatpush1.msra.mxu0 0.0
        %981 = vmatprep.subr.mxu0 0.0
        %982 = vmatpush1.msra.mxu0 0.0
        %983 = vmatprep.subr.mxu0 0.0
        %984 = vmatpush1.msra.mxu0 0.0
        %985 = vmatprep.subr.mxu0 0.0
        %986 = vmatpush1.msra.mxu0 0.0
        %987 = vmatprep.subr.mxu0 0.0
        %988 = vmatpush1.msra.mxu0 0.0
        %989 = vmatprep.subr.mxu0 0.0
        %990 = vmatpush1.msra.mxu0 0.0
        %991 = vmatprep.subr.mxu0 0.0
        %992 = vmatpush1.msra.mxu0 0.0
        %993 = vmatprep.subr.mxu0 0.0
        %994 = vmatpush1.msra.mxu0 0.0
        %995 = vmatprep.subr.mxu0 0.0
        %996 = vmatpush1.msra.mxu0 0.0
        %997 = vmatprep.subr.mxu0 0.0
        %998 = vmatpush1.msra.mxu0 0.0
        %999 = vmatprep.subr.mxu0 0.0
        %1000 = vmatpush1.msra.mxu0 0.0
        %1001 = vmatprep.subr.mxu0 0.0
        %1002 = vmatpush1.msra.mxu0 0.0
        %1003 = vmatprep.subr.mxu0 0.0
        %1004 = vmatpush1.msra.mxu0 0.0
        %1005 = vmatprep.subr.mxu0 0.0
        %1006 = vmatpush1.msra.mxu0 0.0
        %1007 = vmatprep.subr.mxu0 0.0
        %1008 = vmatpush1.msra.mxu0 0.0
        %1009 = vmatprep.mubr.f32.mxu0 0.0
        %1010 = vmatmul.mubr.f32.gmra.mrb[0].mxu0 %v943
        %v1011 = vpop.f32.mrb[0].mxu0
        %v1012 = vadd.f32 0.0, %v1011
        %v1013 = vpop.f32.mrb[0].mxu0
        %1014 = vdwg.mxu0
        %v1015 = vadd.f32 %v941, %v1012
        %v1016 = vmul.f32 %v535, %v814
        %v1017 = vmul.f32 %v540, %v815
        %v1018 = vmul.f32 %v1016, %v812
        %v1019 = vmul.f32 %v1017, %v813
        %v1020 = vsel %vm382, %v1018, 0.0
        %v1021 = vsel %vm382, %v1019, 0.0
        %v1022 = vadd.f32 %v1020, %v1021
        %v1023 = vrot.slane %v1022, 4
        %v1024 = vadd.f32 %v1022, %v1023
        %v1025 = vrot.slane %v1024, 2
        %v1026 = vadd.f32 %v1024, %v1025
        %v1027 = vrot.slane %v1026, 1
        %v1028 = vadd.f32 %v1026, %v1027
        %v1029 = vmul.f32 %v1028, 0.125
        %v1030 = vsel %vm855, %v1016, -inf
        %v1031 = vsel %vm856, %v1017, -inf
        %v1032 = vsel %vm382, %v1030, -inf
        %v1033 = vsel %vm382, %v1031, -inf
        %v1034 = vmax.f32 %v1032, %v1033
        %v1035 = vrot.slane %v1034, 4
        %v1036 = vmax.f32 %v1034, %v1035
        %v1037 = vrot.slane %v1036, 2
        %v1038 = vmax.f32 %v1036, %v1037
        %v1039 = vrot.slane %v1038, 1
        %v1040 = vmax.f32 %v1038, %v1039
        %v1042 = vsel %vm382, %v1029, 0
        %1044 = vmatprep.subr.mxu0 0.0
        %1045 = vmatpush1.msra.mxu0 %v820
        %1046 = vmatprep.subr.mxu0 0.0
        %1047 = vmatpush1.msra.mxu0 %v821
        %1048 = vmatprep.subr.mxu0 0.0
        %1049 = vmatpush1.msra.mxu0 %v822
        %1050 = vmatprep.subr.mxu0 0.0
        %1051 = vmatpush1.msra.mxu0 %v823
        %1052 = vmatprep.subr.mxu0 0.0
        %1053 = vmatpush1.msra.mxu0 0.0
        %1054 = vmatprep.subr.mxu0 0.0
        %1055 = vmatpush1.msra.mxu0 0.0
        %1056 = vmatprep.subr.mxu0 0.0
        %1057 = vmatpush1.msra.mxu0 0.0
        %1058 = vmatprep.subr.mxu0 0.0
        %1059 = vmatpush1.msra.mxu0 0.0
        %1060 = vmatprep.subr.mxu0 0.0
        %1061 = vmatpush1.msra.mxu0 0.0
        %1062 = vmatprep.subr.mxu0 0.0
        %1063 = vmatpush1.msra.mxu0 0.0
        %1064 = vmatprep.subr.mxu0 0.0
        %1065 = vmatpush1.msra.mxu0 0.0
        %1066 = vmatprep.subr.mxu0 0.0
        %1067 = vmatpush1.msra.mxu0 0.0
        %1068 = vmatprep.subr.mxu0 0.0
        %1069 = vmatpush1.msra.mxu0 0.0
        %1070 = vmatprep.subr.mxu0 0.0
        %1071 = vmatpush1.msra.mxu0 0.0
        %1072 = vmatprep.subr.mxu0 0.0
        %1073 = vmatpush1.msra.mxu0 0.0
        %1074 = vmatprep.subr.mxu0 0.0
        %1075 = vmatpush1.msra.mxu0 0.0
        %1076 = vmatprep.subr.mxu0 0.0
        %1077 = vmatpush1.msra.mxu0 0.0
        %1078 = vmatprep.subr.mxu0 0.0
        %1079 = vmatpush1.msra.mxu0 0.0
        %1080 = vmatprep.subr.mxu0 0.0
        %1081 = vmatpush1.msra.mxu0 0.0
        %1082 = vmatprep.subr.mxu0 0.0
        %1083 = vmatpush1.msra.mxu0 0.0
        %1084 = vmatprep.subr.mxu0 0.0
        %1085 = vmatpush1.msra.mxu0 0.0
        %1086 = vmatprep.subr.mxu0 0.0
        %1087 = vmatpush1.msra.mxu0 0.0
        %1088 = vmatprep.subr.mxu0 0.0
        %1089 = vmatpush1.msra.mxu0 0.0
        %1090 = vmatprep.subr.mxu0 0.0
        %1091 = vmatpush1.msra.mxu0 0.0
        %1092 = vmatprep.subr.mxu0 0.0
        %1093 = vmatpush1.msra.mxu0 0.0
        %1094 = vmatprep.subr.mxu0 0.0
        %1095 = vmatpush1.msra.mxu0 0.0
        %1096 = vmatprep.subr.mxu0 0.0
        %1097 = vmatpush1.msra.mxu0 0.0
        %1098 = vmatprep.subr.mxu0 0.0
        %1099 = vmatpush1.msra.mxu0 0.0
        %1100 = vmatprep.subr.mxu0 0.0
        %1101 = vmatpush1.msra.mxu0 0.0
        %1102 = vmatprep.subr.mxu0 0.0
        %1103 = vmatpush1.msra.mxu0 0.0
        %1104 = vmatprep.subr.mxu0 0.0
        %1105 = vmatpush1.msra.mxu0 0.0
        %1106 = vmatprep.subr.mxu0 0.0
        %1107 = vmatpush1.msra.mxu0 0.0
        %1108 = vmatprep.mubr.f32.mxu0 0.0
        %1109 = vmatmul.mubr.f32.gmra.mrb[0].mxu0 %v1042
        %v1110 = vpop.f32.mrb[0].mxu0
        %v1111 = vadd.f32 0.0, %v1110
        %v1112 = vpop.f32.mrb[0].mxu0
        %1113 = vdwg.mxu0
        %v1114 = vadd.f32 %v1015, %v1111
        %v1116 = vsel %vm382, %v1040, 0
        %1118 = vmatprep.subr.mxu0 0.0
        %1119 = vmatpush1.msra.mxu0 %v832
        %1120 = vmatprep.subr.mxu0 0.0
        %1121 = vmatpush1.msra.mxu0 %v833
        %1122 = vmatprep.subr.mxu0 0.0
        %1123 = vmatpush1.msra.mxu0 %v834
        %1124 = vmatprep.subr.mxu0 0.0
        %1125 = vmatpush1.msra.mxu0 %v835
        %1126 = vmatprep.subr.mxu0 0.0
        %1127 = vmatpush1.msra.mxu0 0.0
        %1128 = vmatprep.subr.mxu0 0.0
        %1129 = vmatpush1.msra.mxu0 0.0
        %1130 = vmatprep.subr.mxu0 0.0
        %1131 = vmatpush1.msra.mxu0 0.0
        %1132 = vmatprep.subr.mxu0 0.0
        %1133 = vmatpush1.msra.mxu0 0.0
        %1134 = vmatprep.subr.mxu0 0.0
        %1135 = vmatpush1.msra.mxu0 0.0
        %1136 = vmatprep.subr.mxu0 0.0
        %1137 = vmatpush1.msra.mxu0 0.0
        %1138 = vmatprep.subr.mxu0 0.0
        %1139 = vmatpush1.msra.mxu0 0.0
        %1140 = vmatprep.subr.mxu0 0.0
        %1141 = vmatpush1.msra.mxu0 0.0
        %1142 = vmatprep.subr.mxu0 0.0
        %1143 = vmatpush1.msra.mxu0 0.0
        %1144 = vmatprep.subr.mxu0 0.0
        %1145 = vmatpush1.msra.mxu0 0.0
        %1146 = vmatprep.subr.mxu0 0.0
        %1147 = vmatpush1.msra.mxu0 0.0
        %1148 = vmatprep.subr.mxu0 0.0
        %1149 = vmatpush1.msra.mxu0 0.0
        %1150 = vmatprep.subr.mxu0 0.0
        %1151 = vmatpush1.msra.mxu0 0.0
        %1152 = vmatprep.subr.mxu0 0.0
        %1153 = vmatpush1.msra.mxu0 0.0
        %1154 = vmatprep.subr.mxu0 0.0
        %1155 = vmatpush1.msra.mxu0 0.0
        %1156 = vmatprep.subr.mxu0 0.0
        %1157 = vmatpush1.msra.mxu0 0.0
        %1158 = vmatprep.subr.mxu0 0.0
        %1159 = vmatpush1.msra.mxu0 0.0
        %1160 = vmatprep.subr.mxu0 0.0
        %1161 = vmatpush1.msra.mxu0 0.0
        %1162 = vmatprep.subr.mxu0 0.0
        %1163 = vmatpush1.msra.mxu0 0.0
        %1164 = vmatprep.subr.mxu0 0.0
        %1165 = vmatpush1.msra.mxu0 0.0
        %1166 = vmatprep.subr.mxu0 0.0
        %1167 = vmatpush1.msra.mxu0 0.0
        %1168 = vmatprep.subr.mxu0 0.0
        %1169 = vmatpush1.msra.mxu0 0.0
        %1170 = vmatprep.subr.mxu0 0.0
        %1171 = vmatpush1.msra.mxu0 0.0
        %1172 = vmatprep.subr.mxu0 0.0
        %1173 = vmatpush1.msra.mxu0 0.0
        %1174 = vmatprep.subr.mxu0 0.0
        %1175 = vmatpush1.msra.mxu0 0.0
        %1176 = vmatprep.subr.mxu0 0.0
        %1177 = vmatpush1.msra.mxu0 0.0
        %1178 = vmatprep.subr.mxu0 0.0
        %1179 = vmatpush1.msra.mxu0 0.0
        %1180 = vmatprep.subr.mxu0 0.0
        %1181 = vmatpush1.msra.mxu0 0.0
        %1182 = vmatprep.mubr.f32.mxu0 0.0
        %1183 = vmatmul.mubr.f32.gmra.mrb[0].mxu0 %v1116
        %v1184 = vpop.f32.mrb[0].mxu0
        %v1185 = vadd.f32 0.0, %v1184
        %v1186 = vpop.f32.mrb[0].mxu0
        %1187 = vdwg.mxu0
        %v1188 = vadd.f32 %v1114, %v1185
        %v1189 = vmul.f32 %v700, %v814
        %v1190 = vmul.f32 %v705, %v815
        %v1191 = vmul.f32 %v1189, %v812
        %v1192 = vmul.f32 %v1190, %v813
        %v1193 = vsel %vm382, %v1191, 0.0
        %v1194 = vsel %vm382, %v1192, 0.0
        %v1195 = vadd.f32 %v1193, %v1194
        %v1196 = vrot.slane %v1195, 4
        %v1197 = vadd.f32 %v1195, %v1196
        %v1198 = vrot.slane %v1197, 2
        %v1199 = vadd.f32 %v1197, %v1198
        %v1200 = vrot.slane %v1199, 1
        %v1201 = vadd.f32 %v1199, %v1200
        %v1202 = vmul.f32 %v1201, 0.125
        %v1203 = vsel %vm855, %v1189, -inf
        %v1204 = vsel %vm856, %v1190, -inf
        %v1205 = vsel %vm382, %v1203, -inf
        %v1206 = vsel %vm382, %v1204, -inf
        %v1207 = vmax.f32 %v1205, %v1206
        %v1208 = vrot.slane %v1207, 4
        %v1209 = vmax.f32 %v1207, %v1208
        %v1210 = vrot.slane %v1209, 2
        %v1211 = vmax.f32 %v1209, %v1210
        %v1212 = vrot.slane %v1211, 1
        %v1213 = vmax.f32 %v1211, %v1212
        %v1215 = vsel %vm382, %v1202, 0
        %1217 = vmatprep.subr.mxu0 0.0
        %1218 = vmatpush1.msra.mxu0 %v824
        %1219 = vmatprep.subr.mxu0 0.0
        %1220 = vmatpush1.msra.mxu0 %v825
        %1221 = vmatprep.subr.mxu0 0.0
        %1222 = vmatpush1.msra.mxu0 %v826
        %1223 = vmatprep.subr.mxu0 0.0
        %1224 = vmatpush1.msra.mxu0 %v827
        %1225 = vmatprep.subr.mxu0 0.0
        %1226 = vmatpush1.msra.mxu0 0.0
        %1227 = vmatprep.subr.mxu0 0.0
        %1228 = vmatpush1.msra.mxu0 0.0
        %1229 = vmatprep.subr.mxu0 0.0
        %1230 = vmatpush1.msra.mxu0 0.0
        %1231 = vmatprep.subr.mxu0 0.0
        %1232 = vmatpush1.msra.mxu0 0.0
        %1233 = vmatprep.subr.mxu0 0.0
        %1234 = vmatpush1.msra.mxu0 0.0
        %1235 = vmatprep.subr.mxu0 0.0
        %1236 = vmatpush1.msra.mxu0 0.0
        %1237 = vmatprep.subr.mxu0 0.0
        %1238 = vmatpush1.msra.mxu0 0.0
        %1239 = vmatprep.subr.mxu0 0.0
        %1240 = vmatpush1.msra.mxu0 0.0
        %1241 = vmatprep.subr.mxu0 0.0
        %1242 = vmatpush1.msra.mxu0 0.0
        %1243 = vmatprep.subr.mxu0 0.0
        %1244 = vmatpush1.msra.mxu0 0.0
        %1245 = vmatprep.subr.mxu0 0.0
        %1246 = vmatpush1.msra.mxu0 0.0
        %1247 = vmatprep.subr.mxu0 0.0
        %1248 = vmatpush1.msra.mxu0 0.0
        %1249 = vmatprep.subr.mxu0 0.0
        %1250 = vmatpush1.msra.mxu0 0.0
        %1251 = vmatprep.subr.mxu0 0.0
        %1252 = vmatpush1.msra.mxu0 0.0
        %1253 = vmatprep.subr.mxu0 0.0
        %1254 = vmatpush1.msra.mxu0 0.0
        %1255 = vmatprep.subr.mxu0 0.0
        %1256 = vmatpush1.msra.mxu0 0.0
        %1257 = vmatprep.subr.mxu0 0.0
        %1258 = vmatpush1.msra.mxu0 0.0
        %1259 = vmatprep.subr.mxu0 0.0
        %1260 = vmatpush1.msra.mxu0 0.0
        %1261 = vmatprep.subr.mxu0 0.0
        %1262 = vmatpush1.msra.mxu0 0.0
        %1263 = vmatprep.subr.mxu0 0.0
        %1264 = vmatpush1.msra.mxu0 0.0
        %1265 = vmatprep.subr.mxu0 0.0
        %1266 = vmatpush1.msra.mxu0 0.0
        %1267 = vmatprep.subr.mxu0 0.0
        %1268 = vmatpush1.msra.mxu0 0.0
        %1269 = vmatprep.subr.mxu0 0.0
        %1270 = vmatpush1.msra.mxu0 0.0
        %1271 = vmatprep.subr.mxu0 0.0
        %1272 = vmatpush1.msra.mxu0 0.0
        %1273 = vmatprep.subr.mxu0 0.0
        %1274 = vmatpush1.msra.mxu0 0.0
        %1275 = vmatprep.subr.mxu0 0.0
        %1276 = vmatpush1.msra.mxu0 0.0
        %1277 = vmatprep.subr.mxu0 0.0
        %1278 = vmatpush1.msra.mxu0 0.0
        %1279 = vmatprep.subr.mxu0 0.0
        %1280 = vmatpush1.msra.mxu0 0.0
        %1281 = vmatprep.mubr.f32.mxu0 0.0
        %1282 = vmatmul.mubr.f32.gmra.mrb[0].mxu0 %v1215
        %v1283 = vpop.f32.mrb[0].mxu0
        %v1284 = vadd.f32 0.0, %v1283
        %v1285 = vpop.f32.mrb[0].mxu0
        %1286 = vdwg.mxu0
        %v1287 = vadd.f32 %v1188, %v1284
        %v1289 = vsel %vm382, %v1213, 0
        %1291 = vmatprep.subr.mxu0 0.0
        %1292 = vmatpush1.msra.mxu0 %v836
        %1293 = vmatprep.subr.mxu0 0.0
        %1294 = vmatpush1.msra.mxu0 %v837
        %1295 = vmatprep.subr.mxu0 0.0
        %1296 = vmatpush1.msra.mxu0 %v838
        %1297 = vmatprep.subr.mxu0 0.0
        %1298 = vmatpush1.msra.mxu0 %v839
        %1299 = vmatprep.subr.mxu0 0.0
        %1300 = vmatpush1.msra.mxu0 0.0
        %1301 = vmatprep.subr.mxu0 0.0
        %1302 = vmatpush1.msra.mxu0 0.0
        %1303 = vmatprep.subr.mxu0 0.0
        %1304 = vmatpush1.msra.mxu0 0.0
        %1305 = vmatprep.subr.mxu0 0.0
        %1306 = vmatpush1.msra.mxu0 0.0
        %1307 = vmatprep.subr.mxu0 0.0
        %1308 = vmatpush1.msra.mxu0 0.0
        %1309 = vmatprep.subr.mxu0 0.0
        %1310 = vmatpush1.msra.mxu0 0.0
        %1311 = vmatprep.subr.mxu0 0.0
        %1312 = vmatpush1.msra.mxu0 0.0
        %1313 = vmatprep.subr.mxu0 0.0
        %1314 = vmatpush1.msra.mxu0 0.0
        %1315 = vmatprep.subr.mxu0 0.0
        %1316 = vmatpush1.msra.mxu0 0.0
        %1317 = vmatprep.subr.mxu0 0.0
        %1318 = vmatpush1.msra.mxu0 0.0
        %1319 = vmatprep.subr.mxu0 0.0
        %1320 = vmatpush1.msra.mxu0 0.0
        %1321 = vmatprep.subr.mxu0 0.0
        %1322 = vmatpush1.msra.mxu0 0.0
        %1323 = vmatprep.subr.mxu0 0.0
        %1324 = vmatpush1.msra.mxu0 0.0
        %1325 = vmatprep.subr.mxu0 0.0
        %1326 = vmatpush1.msra.mxu0 0.0
        %1327 = vmatprep.subr.mxu0 0.0
        %1328 = vmatpush1.msra.mxu0 0.0
        %1329 = vmatprep.subr.mxu0 0.0
        %1330 = vmatpush1.msra.mxu0 0.0
        %1331 = vmatprep.subr.mxu0 0.0
        %1332 = vmatpush1.msra.mxu0 0.0
        %1333 = vmatprep.subr.mxu0 0.0
        %1334 = vmatpush1.msra.mxu0 0.0
        %1335 = vmatprep.subr.mxu0 0.0
        %1336 = vmatpush1.msra.mxu0 0.0
        %1337 = vmatprep.subr.mxu0 0.0
        %1338 = vmatpush1.msra.mxu0 0.0
        %1339 = vmatprep.subr.mxu0 0.0
        %1340 = vmatpush1.msra.mxu0 0.0
        %1341 = vmatprep.subr.mxu0 0.0
        %1342 = vmatpush1.msra.mxu0 0.0
        %1343 = vmatprep.subr.mxu0 0.0
        %1344 = vmatpush1.msra.mxu0 0.0
        %1345 = vmatprep.subr.mxu0 0.0
        %1346 = vmatpush1.msra.mxu0 0.0
        %1347 = vmatprep.subr.mxu0 0.0
        %1348 = vmatpush1.msra.mxu0 0.0
        %1349 = vmatprep.subr.mxu0 0.0
        %1350 = vmatpush1.msra.mxu0 0.0
        %1351 = vmatprep.subr.mxu0 0.0
        %1352 = vmatpush1.msra.mxu0 0.0
        %1353 = vmatprep.subr.mxu0 0.0
        %1354 = vmatpush1.msra.mxu0 0.0
        %1355 = vmatprep.mubr.f32.mxu0 0.0
        %1356 = vmatmul.mubr.f32.gmra.mrb[0].mxu0 %v1289
        %v1357 = vpop.f32.mrb[0].mxu0
        %v1358 = vadd.f32 0.0, %v1357
        %v1359 = vpop.f32.mrb[0].mxu0
        %1360 = vdwg.mxu0
        %v1361 = vadd.f32 %v1287, %v1358
        %v1362 = vmax.f32 %v1361, 0.0
        %v1363 = vld [vmem:[#allocation2 + $0x138] sm:$0xff]
        %v1364 = vld [vmem:[#allocation2 + $0x140] sm:$0xff]
        %v1365 = vld [vmem:[#allocation2 + $0x148] sm:$0xff]
        %v1366 = vld [vmem:[#allocation2 + $0x150] sm:$0xff]
        %v1367 = vld [vmem:[#allocation2 + $0x158] sm:$0x1]
        %v1369 = vsel %vm382, %v1362, 0
        %1371 = vmatprep.subr.mxu0 0.0
        %1372 = vmatpush1.msra.mxu0 %v1363
        %1373 = vmatprep.subr.mxu0 0.0
        %1374 = vmatpush1.msra.mxu0 %v1364
        %1375 = vmatprep.subr.mxu0 0.0
        %1376 = vmatpush1.msra.mxu0 %v1365
        %1377 = vmatprep.subr.mxu0 0.0
        %1378 = vmatpush1.msra.mxu0 %v1366
        %1379 = vmatprep.subr.mxu0 0.0
        %1380 = vmatpush1.msra.mxu0 0.0
        %1381 = vmatprep.subr.mxu0 0.0
        %1382 = vmatpush1.msra.mxu0 0.0
        %1383 = vmatprep.subr.mxu0 0.0
        %1384 = vmatpush1.msra.mxu0 0.0
        %1385 = vmatprep.subr.mxu0 0.0
        %1386 = vmatpush1.msra.mxu0 0.0
        %1387 = vmatprep.subr.mxu0 0.0
        %1388 = vmatpush1.msra.mxu0 0.0
        %1389 = vmatprep.subr.mxu0 0.0
        %1390 = vmatpush1.msra.mxu0 0.0
        %1391 = vmatprep.subr.mxu0 0.0
        %1392 = vmatpush1.msra.mxu0 0.0
        %1393 = vmatprep.subr.mxu0 0.0
        %1394 = vmatpush1.msra.mxu0 0.0
        %1395 = vmatprep.subr.mxu0 0.0
        %1396 = vmatpush1.msra.mxu0 0.0
        %1397 = vmatprep.subr.mxu0 0.0
        %1398 = vmatpush1.msra.mxu0 0.0
        %1399 = vmatprep.subr.mxu0 0.0
        %1400 = vmatpush1.msra.mxu0 0.0
        %1401 = vmatprep.subr.mxu0 0.0
        %1402 = vmatpush1.msra.mxu0 0.0
        %1403 = vmatprep.subr.mxu0 0.0
        %1404 = vmatpush1.msra.mxu0 0.0
        %1405 = vmatprep.subr.mxu0 0.0
        %1406 = vmatpush1.msra.mxu0 0.0
        %1407 = vmatprep.subr.mxu0 0.0
        %1408 = vmatpush1.msra.mxu0 0.0
        %1409 = vmatprep.subr.mxu0 0.0
        %1410 = vmatpush1.msra.mxu0 0.0
        %1411 = vmatprep.subr.mxu0 0.0
        %1412 = vmatpush1.msra.mxu0 0.0
        %1413 = vmatprep.subr.mxu0 0.0
        %1414 = vmatpush1.msra.mxu0 0.0
        %1415 = vmatprep.subr.mxu0 0.0
        %1416 = vmatpush1.msra.mxu0 0.0
        %1417 = vmatprep.subr.mxu0 0.0
        %1418 = vmatpush1.msra.mxu0 0.0
        %1419 = vmatprep.subr.mxu0 0.0
        %1420 = vmatpush1.msra.mxu0 0.0
        %1421 = vmatprep.subr.mxu0 0.0
        %1422 = vmatpush1.msra.mxu0 0.0
        %1423 = vmatprep.subr.mxu0 0.0
        %1424 = vmatpush1.msra.mxu0 0.0
        %1425 = vmatprep.subr.mxu0 0.0
        %1426 = vmatpush1.msra.mxu0 0.0
        %1427 = vmatprep.subr.mxu0 0.0
        %1428 = vmatpush1.msra.mxu0 0.0
        %1429 = vmatprep.subr.mxu0 0.0
        %1430 = vmatpush1.msra.mxu0 0.0
        %1431 = vmatprep.subr.mxu0 0.0
        %1432 = vmatpush1.msra.mxu0 0.0
        %1433 = vmatprep.subr.mxu0 0.0
        %1434 = vmatpush1.msra.mxu0 0.0
        %1435 = vmatprep.mubr.f32.mxu0 0.0
        %1436 = vmatmul.mubr.f32.gmra.mrb[0].mxu0 %v1369
        %v1437 = vpop.f32.mrb[0].mxu0
        %v1438 = vadd.f32 %v1367, %v1437
        %v1439 = vpop.f32.mrb[0].mxu0
        %1440 = vdwg.mxu0
        %v1441 = vmax.f32 %v1438, 0.0
        %v1442 = vld [vmem:[#allocation2 + $0x160] sm:$0xff]
        %v1443 = vld [vmem:[#allocation2 + $0x168] sm:$0xff]
        %v1444 = vld [vmem:[#allocation2 + $0x170] sm:$0x1]
        %v1446 = vsel %vm295, %v1441, 0
        %1448 = vmatprep.subr.mxu0 0.0
        %1449 = vmatpush1.msra.mxu0 %v1442
        %1450 = vmatprep.subr.mxu0 0.0
        %1451 = vmatpush1.msra.mxu0 %v1443
        %1452 = vmatprep.subr.mxu0 0.0
        %1453 = vmatpush1.msra.mxu0 0.0
        %1454 = vmatprep.subr.mxu0 0.0
        %1455 = vmatpush1.msra.mxu0 0.0
        %1456 = vmatprep.subr.mxu0 0.0
        %1457 = vmatpush1.msra.mxu0 0.0
        %1458 = vmatprep.subr.mxu0 0.0
        %1459 = vmatpush1.msra.mxu0 0.0
        %1460 = vmatprep.subr.mxu0 0.0
        %1461 = vmatpush1.msra.mxu0 0.0
        %1462 = vmatprep.subr.mxu0 0.0
        %1463 = vmatpush1.msra.mxu0 0.0
        %1464 = vmatprep.subr.mxu0 0.0
        %1465 = vmatpush1.msra.mxu0 0.0
        %1466 = vmatprep.subr.mxu0 0.0
        %1467 = vmatpush1.msra.mxu0 0.0
        %1468 = vmatprep.subr.mxu0 0.0
        %1469 = vmatpush1.msra.mxu0 0.0
        %1470 = vmatprep.subr.mxu0 0.0
        %1471 = vmatpush1.msra.mxu0 0.0
        %1472 = vmatprep.subr.mxu0 0.0
        %1473 = vmatpush1.msra.mxu0 0.0
        %1474 = vmatprep.subr.mxu0 0.0
        %1475 = vmatpush1.msra.mxu0 0.0
        %1476 = vmatprep.subr.mxu0 0.0
        %1477 = vmatpush1.msra.mxu0 0.0
        %1478 = vmatprep.subr.mxu0 0.0
        %1479 = vmatpush1.msra.mxu0 0.0
        %1480 = vmatprep.subr.mxu0 0.0
        %1481 = vmatpush1.msra.mxu0 0.0
        %1482 = vmatprep.subr.mxu0 0.0
        %1483 = vmatpush1.msra.mxu0 0.0
        %1484 = vmatprep.subr.mxu0 0.0
        %1485 = vmatpush1.msra.mxu0 0.0
        %1486 = vmatprep.subr.mxu0 0.0
        %1487 = vmatpush1.msra.mxu0 0.0
        %1488 = vmatprep.subr.mxu0 0.0
        %1489 = vmatpush1.msra.mxu0 0.0
        %1490 = vmatprep.subr.mxu0 0.0
        %1491 = vmatpush1.msra.mxu0 0.0
        %1492 = vmatprep.subr.mxu0 0.0
        %1493 = vmatpush1.msra.mxu0 0.0
        %1494 = vmatprep.subr.mxu0 0.0
        %1495 = vmatpush1.msra.mxu0 0.0
        %1496 = vmatprep.subr.mxu0 0.0
        %1497 = vmatpush1.msra.mxu0 0.0
        %1498 = vmatprep.subr.mxu0 0.0
        %1499 = vmatpush1.msra.mxu0 0.0
        %1500 = vmatprep.subr.mxu0 0.0
        %1501 = vmatpush1.msra.mxu0 0.0
        %1502 = vmatprep.subr.mxu0 0.0
        %1503 = vmatpush1.msra.mxu0 0.0
        %1504 = vmatprep.subr.mxu0 0.0
        %1505 = vmatpush1.msra.mxu0 0.0
        %1506 = vmatprep.subr.mxu0 0.0
        %1507 = vmatpush1.msra.mxu0 0.0
        %1508 = vmatprep.subr.mxu0 0.0
        %1509 = vmatpush1.msra.mxu0 0.0
        %1510 = vmatprep.subr.mxu0 0.0
        %1511 = vmatpush1.msra.mxu0 0.0
        %1512 = vmatprep.mubr.f32.mxu0 0.0
        %1513 = vmatmul.mubr.f32.gmra.mrb[0].mxu0 %v1446
        %v1514 = vpop.f32.mrb[0].mxu0
        %v1515 = vadd.f32 %v1444, %v1514
        %v1516 = vpop.f32.mrb[0].mxu0
        %1517 = vdwg.mxu0
        %vm1518 = vcmp.lt.s32.totalorder %v773, 4
        %v1519 = vsel %vm1518, %v1515, -1e+30
        %vm1520 = vcmask 1040384
        %v1521 = vsel %vm1520, %v1519, -inf
        %1522 = vmax.xlane.f32.xlu0 %v1521
        %v1523 = vpop.xlane.xlu0 %1522
        %v1524 = vsub.f32 %v1515, %v1523
        %v1525 = vmul.f32 %v1524, 1.442695
        %v1526 = vpow.pop %v1525
        %v1527 = vsel %vm1518, %v1526, 0.0
        %v1528 = vsel %vm1520, %v1527, 0.0
        %1529 = vadd.xlane.f32.xlu0 %v1528
        %v1530 = vpop.xlane.xlu0 %1529
        %v1531 = vlog2.pop %v1530
        %v1532 = vmul.f32 %v1531, 0.6931472
        %v1533 = vsub.f32 %v1524, %v1532
        %v1534 = vsel %vm1518, %v1533, 0.0
        %1535 = vst [vmem:[%s192] sm:$0x1] %v1534
        %s1536 = sand.u32 %s99, 1
        %s1537 = scalar_lea.sflag [#allocation4], %s1536
        %s1538 = sand.u32 %s99, 1
        %s1539 = scalar_lea.vmem [#allocation5], %s1538
        // Predicated region
        $region37: #{tpu_custom_call.1} parent=31 // pred_check
          %p1540 = pneg %p109
        $region38: #{tpu_custom_call.1} parent=31 // pred_check_branch
          %1542 = sbr.rel (%p1540) target = $region40
        $region39: #{tpu_custom_call.1} parent=31 // pred_region
          %s1544 = ssub.s32 16, 16
          %1545 = vsyncadd %s1537, %s1544
          %s1546 = smul.addr %s18, 16
          %s1547 = scalar_lea.hbm %s3, %s1546
          %s1549 = sshll.u32 %s1539, 4
          %s1550 = int_to_ptr.vmem [resolvable:$true] %s1549
          %1552 = dma.vmem_to_hbm [thread:$0]  %s1550, 16, %s1547, %s1537
        $region40: #{tpu_custom_call.1} parent=31 // pred_fallthru
          _
      $region32: #{tpu_custom_call.1} parent=5 // pred_fallthru
        _
      %p1553 = scmp.le.s32.totalorder 2, %s13
      // Predicated region
      $region41: #{tpu_custom_call.1} parent=5 // pred_check
        %p1554 = pneg %p1553
      $region42: #{tpu_custom_call.1} parent=5 // pred_check_branch
        %1556 = sbr.rel (%p1554) target = $region44
      $region43: #{tpu_custom_call.1} parent=5 // pred_region
        %s1557 = ssub.s32 %s13, 2
        // Predicated region
        $region45: #{tpu_custom_call.1} parent=43 // pred_check
          %p1558 = pneg %p115
        $region46: #{tpu_custom_call.1} parent=43 // pred_check_branch
          %1560 = sbr.rel (%p1558) target = $region48
        $region47: #{tpu_custom_call.1} parent=43 // pred_region
          %s1561 = sand.u32 %s100, 1
          %s1562 = scalar_lea.sflag [#allocation4], %s1561
          %s1563 = sand.u32 %s100, 1
          %s1564 = scalar_lea.vmem [#allocation5], %s1563
          %1565 = dma.done %s1562, 16
        $region48: #{tpu_custom_call.1} parent=43 // pred_fallthru
          _
      $region44: #{tpu_custom_call.1} parent=5 // pred_fallthru
        _
    $region6: #{tpu_custom_call.1} parent=1 // loop_footer
      %s17 = sadd.s32 1, %s13
    $region7: #{tpu_custom_call.1} parent=1 // loop_footer_branch
      %12 = sbr.rel target = $region3
    $region8: #{tpu_custom_call.1} parent=1 // loop_exit
      _
    %1566 = vsyncpa [#allocation3], 1
    %s1567 = scalar_lea.sflag [#allocation3], 1
    %1568 = vsyncpa %s1567, 1
    %1569 = vsyncpa [#allocation4], 1
    %s1570 = scalar_lea.sflag [#allocation4], 1
    %1571 = vsyncpa %s1570, 1

</llo_original>
